<compile_context>
chip_gen: v7x
topology: tpu7x:2x2x1
jax: 0.10.0
libtpu: 0.0.40
codegen_flags: <defaults>
</compile_context>

<pallas_src>
import jax
import jax.numpy as jnp
import numpy as np
from jax.experimental import pallas as pl
from jax.experimental.pallas import tpu as pltpu

# ---------------------------------------------------------------------------
# Static architecture: (conv/pool kernel, padding, has_max_pool) per A-block
# ---------------------------------------------------------------------------
BLOCK_CFG = (
    (3, 1, True),    # A(1,  4, kernel=3, padding=1, max_pool=True)
    (5, 2, True),    # A(4,  8, kernel=5, padding=2, max_pool=True)
    (5, 2, False),   # A(8, 16, kernel=5, padding=2, max_pool=False)
)

MARGIN = 4           # per-sample margin lanes; >= max conv/pool padding (2)
NEG_FILL = -1.0e30   # finite stand-in for -inf maxpool padding; kept far from
                     # float32 max so it is safe inside MXU f32 matmul passes.


def _pool_out_len(L, k, p):
    # PyTorch MaxPool1d, stride == kernel_size, floor mode.
    return (L + 2 * p - k) // k + 1


def _round_up(a, b):
    return -(-a // b) * b


# ---------------------------------------------------------------------------
# Single fused Pallas kernel (one group of NB samples per grid step)
# ---------------------------------------------------------------------------
def _make_kernel(layer_meta, W):
    """layer_meta[i] = (slab_row_offset, Cout, Cin) for conv layer i (block-major)."""

    def kernel(x_ref, w_ref, m_ref, sel0_ref, sel1_ref, o_ref):
        sel_refs = (sel0_ref, sel1_ref)
        act = x_ref[0].astype(jnp.float32)                     # (Cin0, W) canvas
        pool_idx = 0
        for b, (K, pad, has_pool) in enumerate(BLOCK_CFG):
            mask_row = m_ref[b:b + 1, :]                       # (1, W) in {0, 1}
            valid = mask_row > 0.5
            for ci in range(3):
                row_off, Cout, Cin = layer_meta[3 * b + ci]
                R = Cin * K + 1                                # K taps * Cin + bias row
                w_aug = w_ref[row_off:row_off + Cout, 0:R]     # (Cout, R)
                # im2col: K lane-shifted copies of the canvas stacked along
                # sublanes (tap-major) + the mask row (folds bias into the dot,
                # added only at valid lanes).  One MXU dot per conv.
                pieces = []
                for k in range(K):
                    sh = (pad - k) % W
                    pieces.append(act if sh == 0
                                  else pltpu.roll(act, sh, axis=1))
                pieces.append(mask_row)
                stacked = jnp.concatenate(pieces, axis=0)      # (R, W)
                y = jnp.dot(w_aug, stacked,
                            preferred_element_type=jnp.float32)
                # Re-establish margins: exact zeros for the next 'same' conv,
                # -inf-like before a maxpool.
                fill = NEG_FILL if (has_pool and ci == 2) else 0.0
                act = jnp.where(valid, y, fill)
            if has_pool:
                # Running window max over K lane shifts, then pick every K-th
                # column for all samples at once with one exact 0/1 selection
                # matmul (it also zeroes margins for the next block).
                m = act
                for t in range(1, K):
                    m = jnp.maximum(m, pltpu.roll(act, (-t) % W, axis=1))
                act = jnp.dot(m, sel_refs[pool_idx][...],
                              preferred_element_type=jnp.float32)
                pool_idx += 1
        o_ref[0] = act.astype(o_ref.dtype)

    return kernel


# ---------------------------------------------------------------------------
# Wrapper: one pallas_call for the whole network
# ---------------------------------------------------------------------------
def model_B(x, params, *, samples_per_step=8):
    """x: (N, 1, L) float32 -> (N, 16, L_final)."""
    out_dtype = x.dtype
    N, Cin0, L0 = x.shape

    NB = max(1, min(int(samples_per_step), N))     # samples per grid step
    G = -(-N // NB)
    N_pad = G * NB
    if N_pad != N:
        x = jnp.concatenate(
            [x, jnp.zeros((N_pad - N, Cin0, L0), x.dtype)], axis=0)

    P = L0 + 2 * MARGIN                            # per-sample lane pitch
    W = max(128, _round_up(NB * P, 128))           # lane-dense canvas width

    # Valid sequence length entering each block.
    Ls = [L0]
    for (K, pad, has_pool) in BLOCK_CFG:
        Ls.append(_pool_out_len(Ls[-1], K, pad) if has_pool else Ls[-1])
    L_fin = Ls[-1]

    # ---- pack all 9 (weight, bias) pairs into ONE lane-dense VMEM slab -----
    layer_meta, blobs = [], []
    row, max_cols = 0, 0
    for bi, blk in enumerate(("L1", "L2", "L3")):
        for i in (1, 2, 3):
            w = params[blk][f"w{i}"]               # (Cout, Cin, K)
            bvec = params[blk][f"b{i}"]            # (Cout,)
            Cout, Cin, K = w.shape
            # tap-major layout matching the in-kernel sublane stacking:
            # Wmat[co, k*Cin + c] = w[co, c, k]; last column = bias.
            wmat = jnp.transpose(w, (0, 2, 1)).reshape(Cout, K * Cin)
            waug = jnp.concatenate(
                [wmat, bvec.reshape(Cout, 1)], axis=1).astype(jnp.float32)
            layer_meta.append((row, Cout, Cin))
            blobs.append((row, waug))
            row += _round_up(Cout, 8)
            max_cols = max(max_cols, K * Cin + 1)
    w_rows = _round_up(row, 8)
    w_cols = _round_up(max_cols, 128)
    wslab = jnp.zeros((w_rows, w_cols), jnp.float32)
    for ro, waug in blobs:
        wslab = wslab.at[ro:ro + waug.shape[0], 0:waug.shape[1]].set(waug)

    # ---- trace-time constants: valid-lane masks + pool selection matrices --
    masks_np = np.zeros((len(BLOCK_CFG), W), np.float32)
    for bi in range(len(BLOCK_CFG)):
        L = Ls[bi]
        for s in range(NB):
            masks_np[bi, s * P + MARGIN:s * P + MARGIN + L] = 1.0

    sels_np = []
    for bi, (K, pad, has_pool) in enumerate(BLOCK_CFG):
        if not has_pool:
            continue
        L = Ls[bi]
        Lp = _pool_out_len(L, K, pad)
        S = np.zeros((W, W), np.float32)
        for s in range(NB):
            base = s * P + MARGIN
            for j in range(Lp):
                S[base - pad + j * K, base + j] = 1.0
        sels_np.append(S)
    assert len(sels_np) == 2
    sel0, sel1 = (jnp.asarray(S) for S in sels_np)
    masks = jnp.asarray(masks_np)

    # ---- lay the batch out along lanes (host-side layout plumbing only) ----
    xp = jnp.pad(x.astype(jnp.float32),
                 ((0, 0), (0, 0), (MARGIN, P - MARGIN - L0)))   # (N_pad, Cin0, P)
    xc = xp.reshape(G, NB, Cin0, P).transpose(0, 2, 1, 3).reshape(G, Cin0, NB * P)
    if W > NB * P:
        xc = jnp.pad(xc, ((0, 0), (0, 0), (0, W - NB * P)))     # (G, Cin0, W)

    Cout_fin = layer_meta[-1][1]
    kernel = _make_kernel(tuple(layer_meta), W)

    out_canvas = pl.pallas_call(
        kernel,
        out_shape=jax.ShapeDtypeStruct((G, Cout_fin, W), jnp.float32),
        grid=(G,),
        in_specs=[
            pl.BlockSpec((1, Cin0, W), lambda g: (g, 0, 0)),            # x canvas
            pl.BlockSpec((w_rows, w_cols), lambda g: (0, 0)),           # weight slab
            pl.BlockSpec((len(BLOCK_CFG), W), lambda g: (0, 0)),        # lane masks
            pl.BlockSpec((W, W), lambda g: (0, 0)),                     # pool sel 0
            pl.BlockSpec((W, W), lambda g: (0, 0)),                     # pool sel 1
        ],
        out_specs=pl.BlockSpec((1, Cout_fin, W), lambda g: (g, 0, 0)),
        compiler_params=pltpu.CompilerParams(
            dimension_semantics=("parallel",)),
    )(xc, wslab, masks, sel0, sel1)

    # ---- de-canvas the output (layout plumbing only) ------------------------
    oc = out_canvas[:, :, :NB * P].reshape(G, Cout_fin, NB, P)
    oc = oc.transpose(0, 2, 1, 3).reshape(N_pad, Cout_fin, P)
    return oc[:N, :, MARGIN:MARGIN + L_fin].astype(out_dtype)


# ---------------------------------------------------------------------------
# Parameter init (PyTorch-style uniform bounds)
# ---------------------------------------------------------------------------
def _init_conv(key, cout, cin, k):
    kw, kb = jax.random.split(key)
    bound = 1.0 / np.sqrt(cin * k)
    w = jax.random.uniform(kw, (cout, cin, k), jnp.float32, -bound, bound)
    b = jax.random.uniform(kb, (cout,), jnp.float32, -bound, bound)
    return w, b


def init_block_A(key, old_value, value, kernel):
    k1, k2, k3 = jax.random.split(key, 3)
    w1, b1 = _init_conv(k1, value, old_value, kernel)
    w2, b2 = _init_conv(k2, value, value, kernel)
    w3, b3 = _init_conv(k3, value, value, kernel)
    return dict(w1=w1, b1=b1, w2=w2, b2=b2, w3=w3, b3=b3)


def init_B(key):
    k1, k2, k3 = jax.random.split(key, 3)
    return dict(
        L1=init_block_A(k1, 1, 4, 3),
        L2=init_block_A(k2, 4, 8, 5),
        L3=init_block_A(k3, 8, 16, 5),
    )


# ---------------------------------------------------------------------------
# Pure-JAX reference (numerical sanity check)
# ---------------------------------------------------------------------------
def _conv_ref(x, w, b, padding):
    out = jax.lax.conv_general_dilated(
        x, w, window_strides=(1,), padding=[(padding, padding)],
        dimension_numbers=("NCH", "OIH", "NCH"))
    return out + b[None, :, None]


def _pool_ref(x, k, p):
    return jax.lax.reduce_window(
        x, -jnp.inf, jax.lax.max,
        window_dimensions=(1, 1, k), window_strides=(1, 1, k),
        padding=[(0, 0), (0, 0), (p, p)])


def _block_ref(x, pr, kernel, padding, is_max_pool):
    x = _conv_ref(x, pr["w1"], pr["b1"], padding)
    x = _conv_ref(x, pr["w2"], pr["b2"], padding)
    x = _conv_ref(x, pr["w3"], pr["b3"], padding)
    if is_max_pool:
        x = _pool_ref(x, kernel, padding)
    return x


def model_B_ref(x, params):
    for name, (k, p, pool) in zip(("L1", "L2", "L3"), BLOCK_CFG):
        x = _block_ref(x, params[name], k, p, pool)
    return x


# ---------------------------------------------------------------------------
if __name__ == "__main__":
    key = jax.random.PRNGKey(0)
    kx, kp = jax.random.split(key)

    N, C_in, L = 2, 1, 64
    x = jax.random.normal(kx, (N, C_in, L), jnp.float32)
    params = init_B(kp)

    fwd = jax.jit(model_B)
    out = jax.block_until_ready(fwd(x, params))

    ref = jax.block_until_ready(model_B_ref(x, params))
    assert out.shape == ref.shape == (2, 16, 5), out.shape
    np.testing.assert_allclose(np.asarray(out), np.asarray(ref),
                               rtol=1e-4, atol=1e-4)

    print("KERNEL_OK")
</pallas_src>

<mosaic_0001>
module attributes {stable_mosaic.version = 11 : i64} {
  func.func @kernel(%arg0: i32, %arg1: memref<1x1x256xf32, #tpu.memory_space<vmem>>, %arg2: memref<96x128xf32, #tpu.memory_space<vmem>>, %arg3: memref<3x256xf32, #tpu.memory_space<vmem>>, %arg4: memref<256x256xf32, #tpu.memory_space<vmem>>, %arg5: memref<256x256xf32, #tpu.memory_space<vmem>>, %arg6: memref<1x16x256xf32, #tpu.memory_space<vmem>>) attributes {dimension_semantics = [#tpu.dimension_semantics<parallel>], iteration_bounds = array<i64: 1>, scalar_prefetch = 0 : i64, scratch_operands = 0 : i64, tpu.core_type = #tpu.core_type<tc>, window_params = [{transform_indices = @transform_0, window_bounds = array<i64: 1, 1, 256>}, {pipeline_mode = #tpu.pipeline_mode<synchronous>, transform_indices = @transform_1, window_bounds = array<i64: 96, 128>}, {pipeline_mode = #tpu.pipeline_mode<synchronous>, transform_indices = @transform_2, window_bounds = array<i64: 3, 256>}, {pipeline_mode = #tpu.pipeline_mode<synchronous>, transform_indices = @transform_3, window_bounds = array<i64: 256, 256>}, {pipeline_mode = #tpu.pipeline_mode<synchronous>, transform_indices = @transform_4, window_bounds = array<i64: 256, 256>}, {transform_indices = @transform_5, window_bounds = array<i64: 1, 16, 256>}]} {
    %c0 = arith.constant 0 : index
    %c0_0 = arith.constant 0 : index
    %c0_1 = arith.constant 0 : index
    %0 = vector.load %arg1[%c0, %c0_0, %c0_1] : memref<1x1x256xf32, #tpu.memory_space<vmem>>, vector<1x1x256xf32>
    %1 = vector.shape_cast %0 : vector<1x1x256xf32> to vector<1x256xf32>
    %c0_2 = arith.constant 0 : index
    %c0_3 = arith.constant 0 : index
    %2 = vector.load %arg3[%c0_2, %c0_3] : memref<3x256xf32, #tpu.memory_space<vmem>>, vector<1x256xf32>
    %cst = arith.constant 5.000000e-01 : f32
    %3 = vector.broadcast %cst : f32 to vector<1x256xf32>
    %4 = arith.cmpf ogt, %2, %3 : vector<1x256xf32>
    %c0_4 = arith.constant 0 : index
    %c0_5 = arith.constant 0 : index
    %5 = vector.load %arg2[%c0_4, %c0_5] : memref<96x128xf32, #tpu.memory_space<vmem>>, vector<4x4xf32>
    %c1_i32 = arith.constant 1 : i32
    %6 = tpu.dynamic_rotate %1 by %c1_i32 dim 1 : vector<1x256xf32>, i32 -> vector<1x256xf32>
    %c255_i32 = arith.constant 255 : i32
    %7 = tpu.dynamic_rotate %1 by %c255_i32 dim 1 : vector<1x256xf32>, i32 -> vector<1x256xf32>
    %8 = tpu.concatenate %6, %1, %7, %2 in 0 : vector<1x256xf32>, vector<1x256xf32>, vector<1x256xf32>, vector<1x256xf32> -> vector<4x256xf32>
    %cst_6 = arith.constant dense<0.000000e+00> : vector<4x256xf32>
    %9 = tpu.matmul %5, %8, %cst_6 {dimension_numbers = #tpu.dot_dimension_numbers<[1], [0], [0], [1], [0, 0, 1, 1], [], []>} : vector<4x4xf32>, vector<4x256xf32>, vector<4x256xf32> -> vector<4x256xf32>
    %cst_7 = arith.constant 0.000000e+00 : f32
    %10 = vector.shape_cast %4 : vector<1x256xi1> to vector<1x256xi1>
    %11 = vector.broadcast %10 : vector<1x256xi1> to vector<4x256xi1>
    %12 = vector.broadcast %cst_7 : f32 to vector<4x256xf32>
    %13 = arith.select %11, %9, %12 : vector<4x256xi1>, vector<4x256xf32>
    %c8 = arith.constant 8 : index
    %c0_8 = arith.constant 0 : index
    %14 = vector.load %arg2[%c8, %c0_8] : memref<96x128xf32, #tpu.memory_space<vmem>>, vector<4x13xf32>
    %c1_i32_9 = arith.constant 1 : i32
    %15 = tpu.dynamic_rotate %13 by %c1_i32_9 dim 1 : vector<4x256xf32>, i32 -> vector<4x256xf32>
    %c255_i32_10 = arith.constant 255 : i32
    %16 = tpu.dynamic_rotate %13 by %c255_i32_10 dim 1 : vector<4x256xf32>, i32 -> vector<4x256xf32>
    %17 = tpu.concatenate %15, %13, %16, %2 in 0 : vector<4x256xf32>, vector<4x256xf32>, vector<4x256xf32>, vector<1x256xf32> -> vector<13x256xf32>
    %cst_11 = arith.constant dense<0.000000e+00> : vector<4x256xf32>
    %18 = tpu.matmul %14, %17, %cst_11 {dimension_numbers = #tpu.dot_dimension_numbers<[1], [0], [0], [1], [0, 0, 1, 1], [], []>} : vector<4x13xf32>, vector<13x256xf32>, vector<4x256xf32> -> vector<4x256xf32>
    %cst_12 = arith.constant 0.000000e+00 : f32
    %19 = vector.shape_cast %4 : vector<1x256xi1> to vector<1x256xi1>
    %20 = vector.broadcast %19 : vector<1x256xi1> to vector<4x256xi1>
    %21 = vector.broadcast %cst_12 : f32 to vector<4x256xf32>
    %22 = arith.select %20, %18, %21 : vector<4x256xi1>, vector<4x256xf32>
    %c16 = arith.constant 16 : index
    %c0_13 = arith.constant 0 : index
    %23 = vector.load %arg2[%c16, %c0_13] : memref<96x128xf32, #tpu.memory_space<vmem>>, vector<4x13xf32>
    %c1_i32_14 = arith.constant 1 : i32
    %24 = tpu.dynamic_rotate %22 by %c1_i32_14 dim 1 : vector<4x256xf32>, i32 -> vector<4x256xf32>
    %c255_i32_15 = arith.constant 255 : i32
    %25 = tpu.dynamic_rotate %22 by %c255_i32_15 dim 1 : vector<4x256xf32>, i32 -> vector<4x256xf32>
    %26 = tpu.concatenate %24, %22, %25, %2 in 0 : vector<4x256xf32>, vector<4x256xf32>, vector<4x256xf32>, vector<1x256xf32> -> vector<13x256xf32>
    %cst_16 = arith.constant dense<0.000000e+00> : vector<4x256xf32>
    %27 = tpu.matmul %23, %26, %cst_16 {dimension_numbers = #tpu.dot_dimension_numbers<[1], [0], [0], [1], [0, 0, 1, 1], [], []>} : vector<4x13xf32>, vector<13x256xf32>, vector<4x256xf32> -> vector<4x256xf32>
    %cst_17 = arith.constant -1.000000e+30 : f32
    %28 = vector.shape_cast %4 : vector<1x256xi1> to vector<1x256xi1>
    %29 = vector.broadcast %28 : vector<1x256xi1> to vector<4x256xi1>
    %30 = vector.broadcast %cst_17 : f32 to vector<4x256xf32>
    %31 = arith.select %29, %27, %30 : vector<4x256xi1>, vector<4x256xf32>
    %c255_i32_18 = arith.constant 255 : i32
    %32 = tpu.dynamic_rotate %31 by %c255_i32_18 dim 1 : vector<4x256xf32>, i32 -> vector<4x256xf32>
    %33 = arith.maximumf %31, %32 : vector<4x256xf32>
    %c254_i32 = arith.constant 254 : i32
    %34 = tpu.dynamic_rotate %31 by %c254_i32 dim 1 : vector<4x256xf32>, i32 -> vector<4x256xf32>
    %35 = arith.maximumf %33, %34 : vector<4x256xf32>
    %c0_19 = arith.constant 0 : index
    %c0_20 = arith.constant 0 : index
    %36 = vector.load %arg4[%c0_19, %c0_20] : memref<256x256xf32, #tpu.memory_space<vmem>>, vector<256x256xf32>
    %cst_21 = arith.constant dense<0.000000e+00> : vector<4x256xf32>
    %37 = tpu.matmul %35, %36, %cst_21 {dimension_numbers = #tpu.dot_dimension_numbers<[1], [0], [0], [1], [0, 0, 1, 1], [], []>} : vector<4x256xf32>, vector<256x256xf32>, vector<4x256xf32> -> vector<4x256xf32>
    %c1 = arith.constant 1 : index
    %c0_22 = arith.constant 0 : index
    %38 = vector.load %arg3[%c1, %c0_22] : memref<3x256xf32, #tpu.memory_space<vmem>>, vector<1x256xf32>
    %cst_23 = arith.constant 5.000000e-01 : f32
    %39 = vector.broadcast %cst_23 : f32 to vector<1x256xf32>
    %40 = arith.cmpf ogt, %38, %39 : vector<1x256xf32>
    %c24 = arith.constant 24 : index
    %c0_24 = arith.constant 0 : index
    %41 = vector.load %arg2[%c24, %c0_24] : memref<96x128xf32, #tpu.memory_space<vmem>>, vector<8x21xf32>
    %c2_i32 = arith.constant 2 : i32
    %42 = tpu.dynamic_rotate %37 by %c2_i32 dim 1 : vector<4x256xf32>, i32 -> vector<4x256xf32>
    %c1_i32_25 = arith.constant 1 : i32
    %43 = tpu.dynamic_rotate %37 by %c1_i32_25 dim 1 : vector<4x256xf32>, i32 -> vector<4x256xf32>
    %c255_i32_26 = arith.constant 255 : i32
    %44 = tpu.dynamic_rotate %37 by %c255_i32_26 dim 1 : vector<4x256xf32>, i32 -> vector<4x256xf32>
    %c254_i32_27 = arith.constant 254 : i32
    %45 = tpu.dynamic_rotate %37 by %c254_i32_27 dim 1 : vector<4x256xf32>, i32 -> vector<4x256xf32>
    %46 = tpu.concatenate %42, %43, %37, %44, %45, %38 in 0 : vector<4x256xf32>, vector<4x256xf32>, vector<4x256xf32>, vector<4x256xf32>, vector<4x256xf32>, vector<1x256xf32> -> vector<21x256xf32>
    %cst_28 = arith.constant dense<0.000000e+00> : vector<8x256xf32>
    %47 = tpu.matmul %41, %46, %cst_28 {dimension_numbers = #tpu.dot_dimension_numbers<[1], [0], [0], [1], [0, 0, 1, 1], [], []>} : vector<8x21xf32>, vector<21x256xf32>, vector<8x256xf32> -> vector<8x256xf32>
    %cst_29 = arith.constant 0.000000e+00 : f32
    %48 = vector.shape_cast %40 : vector<1x256xi1> to vector<1x256xi1>
    %49 = vector.broadcast %48 : vector<1x256xi1> to vector<8x256xi1>
    %50 = vector.broadcast %cst_29 : f32 to vector<8x256xf32>
    %51 = arith.select %49, %47, %50 : vector<8x256xi1>, vector<8x256xf32>
    %c32 = arith.constant 32 : index
    %c0_30 = arith.constant 0 : index
    %52 = vector.load %arg2[%c32, %c0_30] : memref<96x128xf32, #tpu.memory_space<vmem>>, vector<8x41xf32>
    %c2_i32_31 = arith.constant 2 : i32
    %53 = tpu.dynamic_rotate %51 by %c2_i32_31 dim 1 : vector<8x256xf32>, i32 -> vector<8x256xf32>
    %c1_i32_32 = arith.constant 1 : i32
    %54 = tpu.dynamic_rotate %51 by %c1_i32_32 dim 1 : vector<8x256xf32>, i32 -> vector<8x256xf32>
    %c255_i32_33 = arith.constant 255 : i32
    %55 = tpu.dynamic_rotate %51 by %c255_i32_33 dim 1 : vector<8x256xf32>, i32 -> vector<8x256xf32>
    %c254_i32_34 = arith.constant 254 : i32
    %56 = tpu.dynamic_rotate %51 by %c254_i32_34 dim 1 : vector<8x256xf32>, i32 -> vector<8x256xf32>
    %57 = tpu.concatenate %53, %54, %51, %55, %56, %38 in 0 : vector<8x256xf32>, vector<8x256xf32>, vector<8x256xf32>, vector<8x256xf32>, vector<8x256xf32>, vector<1x256xf32> -> vector<41x256xf32>
    %cst_35 = arith.constant dense<0.000000e+00> : vector<8x256xf32>
    %58 = tpu.matmul %52, %57, %cst_35 {dimension_numbers = #tpu.dot_dimension_numbers<[1], [0], [0], [1], [0, 0, 1, 1], [], []>} : vector<8x41xf32>, vector<41x256xf32>, vector<8x256xf32> -> vector<8x256xf32>
    %cst_36 = arith.constant 0.000000e+00 : f32
    %59 = vector.shape_cast %40 : vector<1x256xi1> to vector<1x256xi1>
    %60 = vector.broadcast %59 : vector<1x256xi1> to vector<8x256xi1>
    %61 = vector.broadcast %cst_36 : f32 to vector<8x256xf32>
    %62 = arith.select %60, %58, %61 : vector<8x256xi1>, vector<8x256xf32>
    %c40 = arith.constant 40 : index
    %c0_37 = arith.constant 0 : index
    %63 = vector.load %arg2[%c40, %c0_37] : memref<96x128xf32, #tpu.memory_space<vmem>>, vector<8x41xf32>
    %c2_i32_38 = arith.constant 2 : i32
    %64 = tpu.dynamic_rotate %62 by %c2_i32_38 dim 1 : vector<8x256xf32>, i32 -> vector<8x256xf32>
    %c1_i32_39 = arith.constant 1 : i32
    %65 = tpu.dynamic_rotate %62 by %c1_i32_39 dim 1 : vector<8x256xf32>, i32 -> vector<8x256xf32>
    %c255_i32_40 = arith.constant 255 : i32
    %66 = tpu.dynamic_rotate %62 by %c255_i32_40 dim 1 : vector<8x256xf32>, i32 -> vector<8x256xf32>
    %c254_i32_41 = arith.constant 254 : i32
    %67 = tpu.dynamic_rotate %62 by %c254_i32_41 dim 1 : vector<8x256xf32>, i32 -> vector<8x256xf32>
    %68 = tpu.concatenate %64, %65, %62, %66, %67, %38 in 0 : vector<8x256xf32>, vector<8x256xf32>, vector<8x256xf32>, vector<8x256xf32>, vector<8x256xf32>, vector<1x256xf32> -> vector<41x256xf32>
    %cst_42 = arith.constant dense<0.000000e+00> : vector<8x256xf32>
    %69 = tpu.matmul %63, %68, %cst_42 {dimension_numbers = #tpu.dot_dimension_numbers<[1], [0], [0], [1], [0, 0, 1, 1], [], []>} : vector<8x41xf32>, vector<41x256xf32>, vector<8x256xf32> -> vector<8x256xf32>
    %cst_43 = arith.constant -1.000000e+30 : f32
    %70 = vector.shape_cast %40 : vector<1x256xi1> to vector<1x256xi1>
    %71 = vector.broadcast %70 : vector<1x256xi1> to vector<8x256xi1>
    %72 = vector.broadcast %cst_43 : f32 to vector<8x256xf32>
    %73 = arith.select %71, %69, %72 : vector<8x256xi1>, vector<8x256xf32>
    %c255_i32_44 = arith.constant 255 : i32
    %74 = tpu.dynamic_rotate %73 by %c255_i32_44 dim 1 : vector<8x256xf32>, i32 -> vector<8x256xf32>
    %75 = arith.maximumf %73, %74 : vector<8x256xf32>
    %c254_i32_45 = arith.constant 254 : i32
    %76 = tpu.dynamic_rotate %73 by %c254_i32_45 dim 1 : vector<8x256xf32>, i32 -> vector<8x256xf32>
    %77 = arith.maximumf %75, %76 : vector<8x256xf32>
    %c253_i32 = arith.constant 253 : i32
    %78 = tpu.dynamic_rotate %73 by %c253_i32 dim 1 : vector<8x256xf32>, i32 -> vector<8x256xf32>
    %79 = arith.maximumf %77, %78 : vector<8x256xf32>
    %c252_i32 = arith.constant 252 : i32
    %80 = tpu.dynamic_rotate %73 by %c252_i32 dim 1 : vector<8x256xf32>, i32 -> vector<8x256xf32>
    %81 = arith.maximumf %79, %80 : vector<8x256xf32>
    %c0_46 = arith.constant 0 : index
    %c0_47 = arith.constant 0 : index
    %82 = vector.load %arg5[%c0_46, %c0_47] : memref<256x256xf32, #tpu.memory_space<vmem>>, vector<256x256xf32>
    %cst_48 = arith.constant dense<0.000000e+00> : vector<8x256xf32>
    %83 = tpu.matmul %81, %82, %cst_48 {dimension_numbers = #tpu.dot_dimension_numbers<[1], [0], [0], [1], [0, 0, 1, 1], [], []>} : vector<8x256xf32>, vector<256x256xf32>, vector<8x256xf32> -> vector<8x256xf32>
    %c2 = arith.constant 2 : index
    %c0_49 = arith.constant 0 : index
    %84 = vector.load %arg3[%c2, %c0_49] : memref<3x256xf32, #tpu.memory_space<vmem>>, vector<1x256xf32>
    %cst_50 = arith.constant 5.000000e-01 : f32
    %85 = vector.broadcast %cst_50 : f32 to vector<1x256xf32>
    %86 = arith.cmpf ogt, %84, %85 : vector<1x256xf32>
    %c48 = arith.constant 48 : index
    %c0_51 = arith.constant 0 : index
    %87 = vector.load %arg2[%c48, %c0_51] : memref<96x128xf32, #tpu.memory_space<vmem>>, vector<16x41xf32>
    %c2_i32_52 = arith.constant 2 : i32
    %88 = tpu.dynamic_rotate %83 by %c2_i32_52 dim 1 : vector<8x256xf32>, i32 -> vector<8x256xf32>
    %c1_i32_53 = arith.constant 1 : i32
    %89 = tpu.dynamic_rotate %83 by %c1_i32_53 dim 1 : vector<8x256xf32>, i32 -> vector<8x256xf32>
    %c255_i32_54 = arith.constant 255 : i32
    %90 = tpu.dynamic_rotate %83 by %c255_i32_54 dim 1 : vector<8x256xf32>, i32 -> vector<8x256xf32>
    %c254_i32_55 = arith.constant 254 : i32
    %91 = tpu.dynamic_rotate %83 by %c254_i32_55 dim 1 : vector<8x256xf32>, i32 -> vector<8x256xf32>
    %92 = tpu.concatenate %88, %89, %83, %90, %91, %84 in 0 : vector<8x256xf32>, vector<8x256xf32>, vector<8x256xf32>, vector<8x256xf32>, vector<8x256xf32>, vector<1x256xf32> -> vector<41x256xf32>
    %cst_56 = arith.constant dense<0.000000e+00> : vector<16x256xf32>
    %93 = tpu.matmul %87, %92, %cst_56 {dimension_numbers = #tpu.dot_dimension_numbers<[1], [0], [0], [1], [0, 0, 1, 1], [], []>} : vector<16x41xf32>, vector<41x256xf32>, vector<16x256xf32> -> vector<16x256xf32>
    %cst_57 = arith.constant 0.000000e+00 : f32
    %94 = vector.shape_cast %86 : vector<1x256xi1> to vector<1x256xi1>
    %95 = vector.broadcast %94 : vector<1x256xi1> to vector<16x256xi1>
    %96 = vector.broadcast %cst_57 : f32 to vector<16x256xf32>
    %97 = arith.select %95, %93, %96 : vector<16x256xi1>, vector<16x256xf32>
    %c64 = arith.constant 64 : index
    %c0_58 = arith.constant 0 : index
    %98 = vector.load %arg2[%c64, %c0_58] : memref<96x128xf32, #tpu.memory_space<vmem>>, vector<16x81xf32>
    %c2_i32_59 = arith.constant 2 : i32
    %99 = tpu.dynamic_rotate %97 by %c2_i32_59 dim 1 : vector<16x256xf32>, i32 -> vector<16x256xf32>
    %c1_i32_60 = arith.constant 1 : i32
    %100 = tpu.dynamic_rotate %97 by %c1_i32_60 dim 1 : vector<16x256xf32>, i32 -> vector<16x256xf32>
    %c255_i32_61 = arith.constant 255 : i32
    %101 = tpu.dynamic_rotate %97 by %c255_i32_61 dim 1 : vector<16x256xf32>, i32 -> vector<16x256xf32>
    %c254_i32_62 = arith.constant 254 : i32
    %102 = tpu.dynamic_rotate %97 by %c254_i32_62 dim 1 : vector<16x256xf32>, i32 -> vector<16x256xf32>
    %103 = tpu.concatenate %99, %100, %97, %101, %102, %84 in 0 : vector<16x256xf32>, vector<16x256xf32>, vector<16x256xf32>, vector<16x256xf32>, vector<16x256xf32>, vector<1x256xf32> -> vector<81x256xf32>
    %cst_63 = arith.constant dense<0.000000e+00> : vector<16x256xf32>
    %104 = tpu.matmul %98, %103, %cst_63 {dimension_numbers = #tpu.dot_dimension_numbers<[1], [0], [0], [1], [0, 0, 1, 1], [], []>} : vector<16x81xf32>, vector<81x256xf32>, vector<16x256xf32> -> vector<16x256xf32>
    %cst_64 = arith.constant 0.000000e+00 : f32
    %105 = vector.shape_cast %86 : vector<1x256xi1> to vector<1x256xi1>
    %106 = vector.broadcast %105 : vector<1x256xi1> to vector<16x256xi1>
    %107 = vector.broadcast %cst_64 : f32 to vector<16x256xf32>
    %108 = arith.select %106, %104, %107 : vector<16x256xi1>, vector<16x256xf32>
    %c80 = arith.constant 80 : index
    %c0_65 = arith.constant 0 : index
    %109 = vector.load %arg2[%c80, %c0_65] : memref<96x128xf32, #tpu.memory_space<vmem>>, vector<16x81xf32>
    %c2_i32_66 = arith.constant 2 : i32
    %110 = tpu.dynamic_rotate %108 by %c2_i32_66 dim 1 : vector<16x256xf32>, i32 -> vector<16x256xf32>
    %c1_i32_67 = arith.constant 1 : i32
    %111 = tpu.dynamic_rotate %108 by %c1_i32_67 dim 1 : vector<16x256xf32>, i32 -> vector<16x256xf32>
    %c255_i32_68 = arith.constant 255 : i32
    %112 = tpu.dynamic_rotate %108 by %c255_i32_68 dim 1 : vector<16x256xf32>, i32 -> vector<16x256xf32>
    %c254_i32_69 = arith.constant 254 : i32
    %113 = tpu.dynamic_rotate %108 by %c254_i32_69 dim 1 : vector<16x256xf32>, i32 -> vector<16x256xf32>
    %114 = tpu.concatenate %110, %111, %108, %112, %113, %84 in 0 : vector<16x256xf32>, vector<16x256xf32>, vector<16x256xf32>, vector<16x256xf32>, vector<16x256xf32>, vector<1x256xf32> -> vector<81x256xf32>
    %cst_70 = arith.constant dense<0.000000e+00> : vector<16x256xf32>
    %115 = tpu.matmul %109, %114, %cst_70 {dimension_numbers = #tpu.dot_dimension_numbers<[1], [0], [0], [1], [0, 0, 1, 1], [], []>} : vector<16x81xf32>, vector<81x256xf32>, vector<16x256xf32> -> vector<16x256xf32>
    %cst_71 = arith.constant 0.000000e+00 : f32
    %116 = vector.shape_cast %86 : vector<1x256xi1> to vector<1x256xi1>
    %117 = vector.broadcast %116 : vector<1x256xi1> to vector<16x256xi1>
    %118 = vector.broadcast %cst_71 : f32 to vector<16x256xf32>
    %119 = arith.select %117, %115, %118 : vector<16x256xi1>, vector<16x256xf32>
    %c0_72 = arith.constant 0 : index
    %c0_73 = arith.constant 0 : index
    %c0_74 = arith.constant 0 : index
    %120 = vector.load %arg6[%c0_72, %c0_73, %c0_74] : memref<1x16x256xf32, #tpu.memory_space<vmem>>, vector<1x16x256xf32>
    %121 = vector.shape_cast %120 : vector<1x16x256xf32> to vector<16x256xf32>
    %122 = vector.shape_cast %119 : vector<16x256xf32> to vector<1x16x256xf32>
    tpu.vector_store %arg6[%c0_72, %c0_73, %c0_74], %122 {strides = array<i32>} : memref<1x16x256xf32, #tpu.memory_space<vmem>>, vector<1x16x256xf32>,
    return
  }
  func.func @transform_0(%arg0: i32) -> (i32, i32, i32) {
    %c0_i32 = arith.constant 0 : i32
    %c0_i32_0 = arith.constant 0 : i32
    %c0_i32_1 = arith.constant 0 : i32
    return %arg0, %c0_i32, %c0_i32_0 : i32, i32, i32
  }
  func.func @transform_1(%arg0: i32) -> (i32, i32) {
    %c0_i32 = arith.constant 0 : i32
    %c0_i32_0 = arith.constant 0 : i32
    %c0_i32_1 = arith.constant 0 : i32
    return %c0_i32, %c0_i32_0 : i32, i32
  }
  func.func @transform_2(%arg0: i32) -> (i32, i32) {
    %c0_i32 = arith.constant 0 : i32
    %c0_i32_0 = arith.constant 0 : i32
    %c0_i32_1 = arith.constant 0 : i32
    return %c0_i32, %c0_i32_0 : i32, i32
  }
  func.func @transform_3(%arg0: i32) -> (i32, i32) {
    %c0_i32 = arith.constant 0 : i32
    %c0_i32_0 = arith.constant 0 : i32
    %c0_i32_1 = arith.constant 0 : i32
    return %c0_i32, %c0_i32_0 : i32, i32
  }
  func.func @transform_4(%arg0: i32) -> (i32, i32) {
    %c0_i32 = arith.constant 0 : i32
    %c0_i32_0 = arith.constant 0 : i32
    %c0_i32_1 = arith.constant 0 : i32
    return %c0_i32, %c0_i32_0 : i32, i32
  }
  func.func @transform_5(%arg0: i32) -> (i32, i32, i32) {
    %c0_i32 = arith.constant 0 : i32
    %c0_i32_0 = arith.constant 0 : i32
    %c0_i32_1 = arith.constant 0 : i32
    return %arg0, %c0_i32, %c0_i32_0 : i32, i32, i32
  }
}

</mosaic_0001>

<llo_original>
// kernel: model_B.1
$region0: #{model_B.1}
  #allocation0 [shape = 'u32[]', space=smem, size = 0x4, offset = 0x4, fixed_abs, tag = 'smem constant byte address 0x4 - core index']
  #allocation1 [shape = 'u32[144,128]{1,0:T(1,128)}', space=vmem, size = 0x12000, scoped, tag = 'internal scratch']
  %s0 = inlined_call_operand.vmem [shape: f32[1,1,256], index: 0, kind: input, shape index: {}]
  %s1 = inlined_call_operand.vmem [shape: f32[96,128], index: 1, kind: input, shape index: {}]
  %s2 = inlined_call_operand.vmem [shape: f32[3,256], index: 2, kind: input, shape index: {}]
  %s3 = inlined_call_operand.vmem [shape: f32[256,256], index: 3, kind: input, shape index: {}]
  %s4 = inlined_call_operand.vmem [shape: f32[256,256], index: 4, kind: input, shape index: {}]
  %s5 = inlined_call_operand.vmem [shape: f32[1,16,256], index: 5, kind: output, shape index: {}]
  %s6 = sld [smem:[#allocation0]]
  $region30: #{model_B.1} parent=0
    _
  %s8 = ssub.s32 1, %s6
  %s9 = scalar_select 0, %s8, %s6
  // Predicated region
  $region2: #{model_B.1} parent=0 // pred_check
    _
  $region3: #{model_B.1} parent=0 // pred_check_branch
    %11 = sbr.rel (0) target = $region5
  $region4: #{model_B.1} parent=0 // pred_region
    _
  $region5: #{model_B.1} parent=0 // pred_fallthru
    _
  // Predicated region
  $region6: #{model_B.1} parent=0 // pred_check
    _
  $region7: #{model_B.1} parent=0 // pred_check_branch
    %13 = sbr.rel (0) target = $region9
  $region8: #{model_B.1} parent=0 // pred_region
    _
  $region9: #{model_B.1} parent=0 // pred_fallthru
    _
  // Predicated region
  $region10: #{model_B.1} parent=0 // pred_check
    _
  $region11: #{model_B.1} parent=0 // pred_check_branch
    %15 = sbr.rel (0) target = $region13
  $region12: #{model_B.1} parent=0 // pred_region
    _
  $region13: #{model_B.1} parent=0 // pred_fallthru
    _
  // Predicated region
  $region14: #{model_B.1} parent=0 // pred_check
    _
  $region15: #{model_B.1} parent=0 // pred_check_branch
    %17 = sbr.rel (0) target = $region17
  $region16: #{model_B.1} parent=0 // pred_region
    _
  $region17: #{model_B.1} parent=0 // pred_fallthru
    _
  // Predicated region
  $region18: #{model_B.1} parent=0 // pred_check
    _
  $region19: #{model_B.1} parent=0 // pred_check_branch
    %19 = sbr.rel (0) target = $region21
  $region20: #{model_B.1} parent=0 // pred_region
    _
  $region21: #{model_B.1} parent=0 // pred_fallthru
    _
  %v20 = vld [vmem:[%s0] sm:$0x3]
  %v21 = vld [vmem:[%s2] ss:$4 sm:$0x3]
  %vm22 = vcmp.gt.f32.partialorder %v21, 0.5
  %v23 = vld [vmem:[%s1] sm:$0xf]
  %v25 = vlaneseq
  %v26 = vshrl.u32 %v25, 7
  %v27 = vsub.s32 0, %v26
  %v28 = vrot.slane %v20, %v27
  %v29 = vlaneseq
  %v30 = vshrl.u32 %v29, 7
  %v31 = vsub.s32 1, %v30
  %v32 = vrot.slane %v20, %v31
  %35 = vrot.lane.b32.xlu0 %v28, 1
  %v36 = vpop.permute.xlu0 %35
  %37 = vrot.lane.b32.xlu0 %v32, 1
  %v38 = vpop.permute.xlu0 %37
  %v39 = vlaneseq
  %v40 = vand.u32 %v39, 127
  %vm41 = vcmp.lt.s32.totalorder %v40, 1
  %v42 = vsel %vm41, %v36, %v38
  %v43 = vsel %vm41, %v38, %v36
  %44 = vrot.lane.b32.xlu0 %v28, 127
  %v45 = vpop.permute.xlu0 %44
  %46 = vrot.lane.b32.xlu0 %v32, 127
  %v47 = vpop.permute.xlu0 %46
  %vm48 = vcmp.lt.s32.totalorder %v40, 127
  %v49 = vsel %vm48, %v45, %v47
  %v50 = vsel %vm48, %v47, %v45
  %v53 = vrot.slane %v49, 6
  %v54 = vrot.slane %v50, 6
  %v58 = vlaneseq
  %v59 = vshrl.u32 %v58, 7
  %v60 = vsub.s32 0, %v59
  %v61 = vrot.slane %v21, %v60
  %v62 = vlaneseq
  %v63 = vshrl.u32 %v62, 7
  %v64 = vsub.s32 1, %v63
  %v65 = vrot.slane %v21, %v64
  %vm68 = vcmask 1040384
  %v69 = vsel %vm68, %v43, %v28
  %v70 = vsel %vm68, %v42, %v32
  %vm71 = vcmask 1041408
  %v72 = vsel %vm71, %v69, %v53
  %v73 = vsel %vm71, %v70, %v54
  %vm74 = vcmask 1042432
  %v75 = vsel %vm74, %v72, %v61
  %v76 = vsel %vm74, %v73, %v65
  %vm77 = vcmask 31744
  %v79 = vsel %vm77, %v23, 0
  %vm81 = vcmask 1043456
  %v83 = vsel %vm81, %v75, 0
  %v86 = vsel %vm81, %v76, 0
  %88 = vmatprep.subr.mxu0 %v86
  %89 = vmatpush1.msra.mxu0 %v83
  %90 = vmatprep.subr.mxu0 0.0
  %91 = vmatpush1.msra.mxu0 0.0
  %92 = vmatprep.subr.mxu0 0.0
  %93 = vmatpush1.msra.mxu0 0.0
  %94 = vmatprep.subr.mxu0 0.0
  %95 = vmatpush1.msra.mxu0 0.0
  %96 = vmatprep.subr.mxu0 0.0
  %97 = vmatpush1.msra.mxu0 0.0
  %98 = vmatprep.subr.mxu0 0.0
  %99 = vmatpush1.msra.mxu0 0.0
  %100 = vmatprep.subr.mxu0 0.0
  %101 = vmatpush1.msra.mxu0 0.0
  %102 = vmatprep.subr.mxu0 0.0
  %103 = vmatpush1.msra.mxu0 0.0
  %104 = vmatprep.subr.mxu0 0.0
  %105 = vmatpush1.msra.mxu0 0.0
  %106 = vmatprep.subr.mxu0 0.0
  %107 = vmatpush1.msra.mxu0 0.0
  %108 = vmatprep.subr.mxu0 0.0
  %109 = vmatpush1.msra.mxu0 0.0
  %110 = vmatprep.subr.mxu0 0.0
  %111 = vmatpush1.msra.mxu0 0.0
  %112 = vmatprep.subr.mxu0 0.0
  %113 = vmatpush1.msra.mxu0 0.0
  %114 = vmatprep.subr.mxu0 0.0
  %115 = vmatpush1.msra.mxu0 0.0
  %116 = vmatprep.subr.mxu0 0.0
  %117 = vmatpush1.msra.mxu0 0.0
  %118 = vmatprep.subr.mxu0 0.0
  %119 = vmatpush1.msra.mxu0 0.0
  %120 = vmatprep.subr.mxu0 0.0
  %121 = vmatpush1.msra.mxu0 0.0
  %122 = vmatprep.subr.mxu0 0.0
  %123 = vmatpush1.msra.mxu0 0.0
  %124 = vmatprep.subr.mxu0 0.0
  %125 = vmatpush1.msra.mxu0 0.0
  %126 = vmatprep.subr.mxu0 0.0
  %127 = vmatpush1.msra.mxu0 0.0
  %128 = vmatprep.subr.mxu0 0.0
  %129 = vmatpush1.msra.mxu0 0.0
  %130 = vmatprep.subr.mxu0 0.0
  %131 = vmatpush1.msra.mxu0 0.0
  %132 = vmatprep.subr.mxu0 0.0
  %133 = vmatpush1.msra.mxu0 0.0
  %134 = vmatprep.subr.mxu0 0.0
  %135 = vmatpush1.msra.mxu0 0.0
  %136 = vmatprep.subr.mxu0 0.0
  %137 = vmatpush1.msra.mxu0 0.0
  %138 = vmatprep.subr.mxu0 0.0
  %139 = vmatpush1.msra.mxu0 0.0
  %140 = vmatprep.subr.mxu0 0.0
  %141 = vmatpush1.msra.mxu0 0.0
  %142 = vmatprep.subr.mxu0 0.0
  %143 = vmatpush1.msra.mxu0 0.0
  %144 = vmatprep.subr.mxu0 0.0
  %145 = vmatpush1.msra.mxu0 0.0
  %146 = vmatprep.subr.mxu0 0.0
  %147 = vmatpush1.msra.mxu0 0.0
  %148 = vmatprep.subr.mxu0 0.0
  %149 = vmatpush1.msra.mxu0 0.0
  %150 = vmatprep.subr.mxu0 0.0
  %151 = vmatpush1.msra.mxu0 0.0
  %152 = vmatprep.mubr.f32.mxu0 0.0
  %153 = vmatmul.mubr.f32.gmra.mrb[0].mxu0 %v79
  %v154 = vpop.f32.mrb[0].mxu0
  %v155 = vadd.f32 0.0, %v154
  %v156 = vpop.f32.mrb[0].mxu0
  %v157 = vadd.f32 0.0, %v156
  %158 = vdwg.mxu0
  %v159 = vsel %vm22, 1, 0
  %v160 = vlaneseq
  %v161 = vshrl.u32 %v160, 7
  %v162 = vsub.s32 0, %v161
  %v163 = vrot.slane %v159, %v162
  %v164 = vlaneseq
  %v165 = vshrl.u32 %v164, 7
  %v166 = vsub.s32 1, %v165
  %v167 = vrot.slane %v159, %v166
  %vm168 = vcmp.eq.s32.totalorder %v163, 1
  %vm169 = vcmp.eq.s32.totalorder %v167, 1
  %v170 = vsel %vm168, %v155, 0.0
  %v171 = vsel %vm169, %v157, 0.0
  %v172 = vld [vmem:[%s1 + $0x8] sm:$0xf]
  %173 = vrot.lane.b32.xlu0 %v170, 1
  %v174 = vpop.permute.xlu0 %173
  %175 = vrot.lane.b32.xlu0 %v171, 1
  %v176 = vpop.permute.xlu0 %175
  %v177 = vsel %vm41, %v174, %v176
  %v178 = vsel %vm41, %v176, %v174
  %179 = vrot.lane.b32.xlu0 %v170, 127
  %v180 = vpop.permute.xlu0 %179
  %181 = vrot.lane.b32.xlu0 %v171, 127
  %v182 = vpop.permute.xlu0 %181
  %v183 = vsel %vm48, %v180, %v182
  %v184 = vsel %vm48, %v182, %v180
  %v187 = vrot.slane %v170, 4
  %v188 = vrot.slane %v171, 4
  %v191 = vsel %vm81, %v178, %v187
  %v192 = vsel %vm81, %v177, %v188
  %v193 = vsel %vm81, %v183, %v61
  %v194 = vsel %vm81, %v184, %v65
  %vm195 = vcmask 105472
  %v197 = vsel %vm195, %v172, 0
  %vm199 = vcmask 1044480
  %v201 = vsel %vm199, %v193, 0
  %v204 = vsel %vm199, %v194, 0
  %206 = vmatprep.subr.mxu0 %v192
  %207 = vmatpush1.msra.mxu0 %v191
  %208 = vmatprep.subr.mxu0 %v204
  %209 = vmatpush1.msra.mxu0 %v201
  %210 = vmatprep.subr.mxu0 0.0
  %211 = vmatpush1.msra.mxu0 0.0
  %212 = vmatprep.subr.mxu0 0.0
  %213 = vmatpush1.msra.mxu0 0.0
  %214 = vmatprep.subr.mxu0 0.0
  %215 = vmatpush1.msra.mxu0 0.0
  %216 = vmatprep.subr.mxu0 0.0
  %217 = vmatpush1.msra.mxu0 0.0
  %218 = vmatprep.subr.mxu0 0.0
  %219 = vmatpush1.msra.mxu0 0.0
  %220 = vmatprep.subr.mxu0 0.0
  %221 = vmatpush1.msra.mxu0 0.0
  %222 = vmatprep.subr.mxu0 0.0
  %223 = vmatpush1.msra.mxu0 0.0
  %224 = vmatprep.subr.mxu0 0.0
  %225 = vmatpush1.msra.mxu0 0.0
  %226 = vmatprep.subr.mxu0 0.0
  %227 = vmatpush1.msra.mxu0 0.0
  %228 = vmatprep.subr.mxu0 0.0
  %229 = vmatpush1.msra.mxu0 0.0
  %230 = vmatprep.subr.mxu0 0.0
  %231 = vmatpush1.msra.mxu0 0.0
  %232 = vmatprep.subr.mxu0 0.0
  %233 = vmatpush1.msra.mxu0 0.0
  %234 = vmatprep.subr.mxu0 0.0
  %235 = vmatpush1.msra.mxu0 0.0
  %236 = vmatprep.subr.mxu0 0.0
  %237 = vmatpush1.msra.mxu0 0.0
  %238 = vmatprep.subr.mxu0 0.0
  %239 = vmatpush1.msra.mxu0 0.0
  %240 = vmatprep.subr.mxu0 0.0
  %241 = vmatpush1.msra.mxu0 0.0
  %242 = vmatprep.subr.mxu0 0.0
  %243 = vmatpush1.msra.mxu0 0.0
  %244 = vmatprep.subr.mxu0 0.0
  %245 = vmatpush1.msra.mxu0 0.0
  %246 = vmatprep.subr.mxu0 0.0
  %247 = vmatpush1.msra.mxu0 0.0
  %248 = vmatprep.subr.mxu0 0.0
  %249 = vmatpush1.msra.mxu0 0.0
  %250 = vmatprep.subr.mxu0 0.0
  %251 = vmatpush1.msra.mxu0 0.0
  %252 = vmatprep.subr.mxu0 0.0
  %253 = vmatpush1.msra.mxu0 0.0
  %254 = vmatprep.subr.mxu0 0.0
  %255 = vmatpush1.msra.mxu0 0.0
  %256 = vmatprep.subr.mxu0 0.0
  %257 = vmatpush1.msra.mxu0 0.0
  %258 = vmatprep.subr.mxu0 0.0
  %259 = vmatpush1.msra.mxu0 0.0
  %260 = vmatprep.subr.mxu0 0.0
  %261 = vmatpush1.msra.mxu0 0.0
  %262 = vmatprep.subr.mxu0 0.0
  %263 = vmatpush1.msra.mxu0 0.0
  %264 = vmatprep.subr.mxu0 0.0
  %265 = vmatpush1.msra.mxu0 0.0
  %266 = vmatprep.subr.mxu0 0.0
  %267 = vmatpush1.msra.mxu0 0.0
  %268 = vmatprep.subr.mxu0 0.0
  %269 = vmatpush1.msra.mxu0 0.0
  %270 = vmatprep.mubr.f32.mxu0 0.0
  %271 = vmatmul.mubr.f32.gmra.mrb[0].mxu0 %v197
  %v272 = vpop.f32.mrb[0].mxu0
  %v273 = vadd.f32 0.0, %v272
  %v274 = vpop.f32.mrb[0].mxu0
  %v275 = vadd.f32 0.0, %v274
  %276 = vdwg.mxu0
  %v277 = vsel %vm168, %v273, 0.0
  %v278 = vsel %vm169, %v275, 0.0
  %v279 = vld [vmem:[%s1 + $0x10] sm:$0xf]
  %280 = vrot.lane.b32.xlu0 %v277, 1
  %v281 = vpop.permute.xlu0 %280
  %282 = vrot.lane.b32.xlu0 %v278, 1
  %v283 = vpop.permute.xlu0 %282
  %v284 = vsel %vm41, %v281, %v283
  %v285 = vsel %vm41, %v283, %v281
  %286 = vrot.lane.b32.xlu0 %v277, 127
  %v287 = vpop.permute.xlu0 %286
  %288 = vrot.lane.b32.xlu0 %v278, 127
  %v289 = vpop.permute.xlu0 %288
  %v290 = vsel %vm48, %v287, %v289
  %v291 = vsel %vm48, %v289, %v287
  %v294 = vrot.slane %v277, 4
  %v295 = vrot.slane %v278, 4
  %v298 = vsel %vm81, %v285, %v294
  %v299 = vsel %vm81, %v284, %v295
  %v300 = vsel %vm81, %v290, %v61
  %v301 = vsel %vm81, %v291, %v65
  %v303 = vsel %vm195, %v279, 0
  %v306 = vsel %vm199, %v300, 0
  %v309 = vsel %vm199, %v301, 0
  %311 = vmatprep.subr.mxu0 %v299
  %312 = vmatpush1.msra.mxu0 %v298
  %313 = vmatprep.subr.mxu0 %v309
  %314 = vmatpush1.msra.mxu0 %v306
  %315 = vmatprep.subr.mxu0 0.0
  %316 = vmatpush1.msra.mxu0 0.0
  %317 = vmatprep.subr.mxu0 0.0
  %318 = vmatpush1.msra.mxu0 0.0
  %319 = vmatprep.subr.mxu0 0.0
  %320 = vmatpush1.msra.mxu0 0.0
  %321 = vmatprep.subr.mxu0 0.0
  %322 = vmatpush1.msra.mxu0 0.0
  %323 = vmatprep.subr.mxu0 0.0
  %324 = vmatpush1.msra.mxu0 0.0
  %325 = vmatprep.subr.mxu0 0.0
  %326 = vmatpush1.msra.mxu0 0.0
  %327 = vmatprep.subr.mxu0 0.0
  %328 = vmatpush1.msra.mxu0 0.0
  %329 = vmatprep.subr.mxu0 0.0
  %330 = vmatpush1.msra.mxu0 0.0
  %331 = vmatprep.subr.mxu0 0.0
  %332 = vmatpush1.msra.mxu0 0.0
  %333 = vmatprep.subr.mxu0 0.0
  %334 = vmatpush1.msra.mxu0 0.0
  %335 = vmatprep.subr.mxu0 0.0
  %336 = vmatpush1.msra.mxu0 0.0
  %337 = vmatprep.subr.mxu0 0.0
  %338 = vmatpush1.msra.mxu0 0.0
  %339 = vmatprep.subr.mxu0 0.0
  %340 = vmatpush1.msra.mxu0 0.0
  %341 = vmatprep.subr.mxu0 0.0
  %342 = vmatpush1.msra.mxu0 0.0
  %343 = vmatprep.subr.mxu0 0.0
  %344 = vmatpush1.msra.mxu0 0.0
  %345 = vmatprep.subr.mxu0 0.0
  %346 = vmatpush1.msra.mxu0 0.0
  %347 = vmatprep.subr.mxu0 0.0
  %348 = vmatpush1.msra.mxu0 0.0
  %349 = vmatprep.subr.mxu0 0.0
  %350 = vmatpush1.msra.mxu0 0.0
  %351 = vmatprep.subr.mxu0 0.0
  %352 = vmatpush1.msra.mxu0 0.0
  %353 = vmatprep.subr.mxu0 0.0
  %354 = vmatpush1.msra.mxu0 0.0
  %355 = vmatprep.subr.mxu0 0.0
  %356 = vmatpush1.msra.mxu0 0.0
  %357 = vmatprep.subr.mxu0 0.0
  %358 = vmatpush1.msra.mxu0 0.0
  %359 = vmatprep.subr.mxu0 0.0
  %360 = vmatpush1.msra.mxu0 0.0
  %361 = vmatprep.subr.mxu0 0.0
  %362 = vmatpush1.msra.mxu0 0.0
  %363 = vmatprep.subr.mxu0 0.0
  %364 = vmatpush1.msra.mxu0 0.0
  %365 = vmatprep.subr.mxu0 0.0
  %366 = vmatpush1.msra.mxu0 0.0
  %367 = vmatprep.subr.mxu0 0.0
  %368 = vmatpush1.msra.mxu0 0.0
  %369 = vmatprep.subr.mxu0 0.0
  %370 = vmatpush1.msra.mxu0 0.0
  %371 = vmatprep.subr.mxu0 0.0
  %372 = vmatpush1.msra.mxu0 0.0
  %373 = vmatprep.subr.mxu0 0.0
  %374 = vmatpush1.msra.mxu0 0.0
  %375 = vmatprep.mubr.f32.mxu0 0.0
  %376 = vmatmul.mubr.f32.gmra.mrb[0].mxu0 %v303
  %v377 = vpop.f32.mrb[0].mxu0
  %v378 = vadd.f32 0.0, %v377
  %v379 = vpop.f32.mrb[0].mxu0
  %v380 = vadd.f32 0.0, %v379
  %381 = vdwg.mxu0
  %v382 = vsel %vm168, %v378, -1e+30
  %v383 = vsel %vm169, %v380, -1e+30
  %384 = vrot.lane.b32.xlu0 %v382, 127
  %v385 = vpop.permute.xlu0 %384
  %386 = vrot.lane.b32.xlu0 %v383, 127
  %v387 = vpop.permute.xlu0 %386
  %v388 = vsel %vm48, %v385, %v387
  %v389 = vsel %vm48, %v387, %v385
  %v390 = vmax.f32 %v382, %v388
  %v391 = vmax.f32 %v383, %v389
  %392 = vrot.lane.b32.xlu0 %v382, 126
  %v393 = vpop.permute.xlu0 %392
  %394 = vrot.lane.b32.xlu0 %v383, 126
  %v395 = vpop.permute.xlu0 %394
  %vm396 = vcmp.lt.s32.totalorder %v40, 126
  %v397 = vsel %vm396, %v393, %v395
  %v398 = vsel %vm396, %v395, %v393
  %v399 = vmax.f32 %v390, %v397
  %v400 = vmax.f32 %v391, %v398
  %v401 = vld [vmem:[%s3] sm:$0xff]
  %v402 = vld [vmem:[%s3 + $0x8] sm:$0xff]
  %v403 = vld [vmem:[%s3 + $0x10] sm:$0xff]
  %v404 = vld [vmem:[%s3 + $0x18] sm:$0xff]
  %v405 = vld [vmem:[%s3 + $0x20] sm:$0xff]
  %v406 = vld [vmem:[%s3 + $0x28] sm:$0xff]
  %v407 = vld [vmem:[%s3 + $0x30] sm:$0xff]
  %v408 = vld [vmem:[%s3 + $0x38] sm:$0xff]
  %v409 = vld [vmem:[%s3 + $0x40] sm:$0xff]
  %v410 = vld [vmem:[%s3 + $0x48] sm:$0xff]
  %v411 = vld [vmem:[%s3 + $0x50] sm:$0xff]
  %v412 = vld [vmem:[%s3 + $0x58] sm:$0xff]
  %v413 = vld [vmem:[%s3 + $0x60] sm:$0xff]
  %v414 = vld [vmem:[%s3 + $0x68] sm:$0xff]
  %v415 = vld [vmem:[%s3 + $0x70] sm:$0xff]
  %v416 = vld [vmem:[%s3 + $0x78] sm:$0xff]
  %v417 = vld [vmem:[%s3 + $0x80] sm:$0xff]
  %v418 = vld [vmem:[%s3 + $0x88] sm:$0xff]
  %v419 = vld [vmem:[%s3 + $0x90] sm:$0xff]
  %v420 = vld [vmem:[%s3 + $0x98] sm:$0xff]
  %v421 = vld [vmem:[%s3 + $0xa0] sm:$0xff]
  %v422 = vld [vmem:[%s3 + $0xa8] sm:$0xff]
  %v423 = vld [vmem:[%s3 + $0xb0] sm:$0xff]
  %v424 = vld [vmem:[%s3 + $0xb8] sm:$0xff]
  %v425 = vld [vmem:[%s3 + $0xc0] sm:$0xff]
  %v426 = vld [vmem:[%s3 + $0xc8] sm:$0xff]
  %v427 = vld [vmem:[%s3 + $0xd0] sm:$0xff]
  %v428 = vld [vmem:[%s3 + $0xd8] sm:$0xff]
  %v429 = vld [vmem:[%s3 + $0xe0] sm:$0xff]
  %v430 = vld [vmem:[%s3 + $0xe8] sm:$0xff]
  %v431 = vld [vmem:[%s3 + $0xf0] sm:$0xff]
  %v432 = vld [vmem:[%s3 + $0xf8] sm:$0xff]
  %v433 = vld [vmem:[%s3 + $0x100] sm:$0xff]
  %v434 = vld [vmem:[%s3 + $0x108] sm:$0xff]
  %v435 = vld [vmem:[%s3 + $0x110] sm:$0xff]
  %v436 = vld [vmem:[%s3 + $0x118] sm:$0xff]
  %v437 = vld [vmem:[%s3 + $0x120] sm:$0xff]
  %v438 = vld [vmem:[%s3 + $0x128] sm:$0xff]
  %v439 = vld [vmem:[%s3 + $0x130] sm:$0xff]
  %v440 = vld [vmem:[%s3 + $0x138] sm:$0xff]
  %v441 = vld [vmem:[%s3 + $0x140] sm:$0xff]
  %v442 = vld [vmem:[%s3 + $0x148] sm:$0xff]
  %v443 = vld [vmem:[%s3 + $0x150] sm:$0xff]
  %v444 = vld [vmem:[%s3 + $0x158] sm:$0xff]
  %v445 = vld [vmem:[%s3 + $0x160] sm:$0xff]
  %v446 = vld [vmem:[%s3 + $0x168] sm:$0xff]
  %v447 = vld [vmem:[%s3 + $0x170] sm:$0xff]
  %v448 = vld [vmem:[%s3 + $0x178] sm:$0xff]
  %v449 = vld [vmem:[%s3 + $0x180] sm:$0xff]
  %v450 = vld [vmem:[%s3 + $0x188] sm:$0xff]
  %v451 = vld [vmem:[%s3 + $0x190] sm:$0xff]
  %v452 = vld [vmem:[%s3 + $0x198] sm:$0xff]
  %v453 = vld [vmem:[%s3 + $0x1a0] sm:$0xff]
  %v454 = vld [vmem:[%s3 + $0x1a8] sm:$0xff]
  %v455 = vld [vmem:[%s3 + $0x1b0] sm:$0xff]
  %v456 = vld [vmem:[%s3 + $0x1b8] sm:$0xff]
  %v457 = vld [vmem:[%s3 + $0x1c0] sm:$0xff]
  %v458 = vld [vmem:[%s3 + $0x1c8] sm:$0xff]
  %v459 = vld [vmem:[%s3 + $0x1d0] sm:$0xff]
  %v460 = vld [vmem:[%s3 + $0x1d8] sm:$0xff]
  %v461 = vld [vmem:[%s3 + $0x1e0] sm:$0xff]
  %v462 = vld [vmem:[%s3 + $0x1e8] sm:$0xff]
  %v463 = vld [vmem:[%s3 + $0x1f0] sm:$0xff]
  %v464 = vld [vmem:[%s3 + $0x1f8] sm:$0xff]
  %465 = vmatprep.subr.mxu0 %v402
  %466 = vmatpush1.msra.mxu0 %v401
  %467 = vmatprep.subr.mxu0 %v404
  %468 = vmatpush1.msra.mxu0 %v403
  %469 = vmatprep.subr.mxu0 %v406
  %470 = vmatpush1.msra.mxu0 %v405
  %471 = vmatprep.subr.mxu0 %v408
  %472 = vmatpush1.msra.mxu0 %v407
  %473 = vmatprep.subr.mxu0 %v410
  %474 = vmatpush1.msra.mxu0 %v409
  %475 = vmatprep.subr.mxu0 %v412
  %476 = vmatpush1.msra.mxu0 %v411
  %477 = vmatprep.subr.mxu0 %v414
  %478 = vmatpush1.msra.mxu0 %v413
  %479 = vmatprep.subr.mxu0 %v416
  %480 = vmatpush1.msra.mxu0 %v415
  %481 = vmatprep.subr.mxu0 %v418
  %482 = vmatpush1.msra.mxu0 %v417
  %483 = vmatprep.subr.mxu0 %v420
  %484 = vmatpush1.msra.mxu0 %v419
  %485 = vmatprep.subr.mxu0 %v422
  %486 = vmatpush1.msra.mxu0 %v421
  %487 = vmatprep.subr.mxu0 %v424
  %488 = vmatpush1.msra.mxu0 %v423
  %489 = vmatprep.subr.mxu0 %v426
  %490 = vmatpush1.msra.mxu0 %v425
  %491 = vmatprep.subr.mxu0 %v428
  %492 = vmatpush1.msra.mxu0 %v427
  %493 = vmatprep.subr.mxu0 %v430
  %494 = vmatpush1.msra.mxu0 %v429
  %495 = vmatprep.subr.mxu0 %v432
  %496 = vmatpush1.msra.mxu0 %v431
  %497 = vmatprep.subr.mxu0 %v434
  %498 = vmatpush1.msra.mxu0 %v433
  %499 = vmatprep.subr.mxu0 %v436
  %500 = vmatpush1.msra.mxu0 %v435
  %501 = vmatprep.subr.mxu0 %v438
  %502 = vmatpush1.msra.mxu0 %v437
  %503 = vmatprep.subr.mxu0 %v440
  %504 = vmatpush1.msra.mxu0 %v439
  %505 = vmatprep.subr.mxu0 %v442
  %506 = vmatpush1.msra.mxu0 %v441
  %507 = vmatprep.subr.mxu0 %v444
  %508 = vmatpush1.msra.mxu0 %v443
  %509 = vmatprep.subr.mxu0 %v446
  %510 = vmatpush1.msra.mxu0 %v445
  %511 = vmatprep.subr.mxu0 %v448
  %512 = vmatpush1.msra.mxu0 %v447
  %513 = vmatprep.subr.mxu0 %v450
  %514 = vmatpush1.msra.mxu0 %v449
  %515 = vmatprep.subr.mxu0 %v452
  %516 = vmatpush1.msra.mxu0 %v451
  %517 = vmatprep.subr.mxu0 %v454
  %518 = vmatpush1.msra.mxu0 %v453
  %519 = vmatprep.subr.mxu0 %v456
  %520 = vmatpush1.msra.mxu0 %v455
  %521 = vmatprep.subr.mxu0 %v458
  %522 = vmatpush1.msra.mxu0 %v457
  %523 = vmatprep.subr.mxu0 %v460
  %524 = vmatpush1.msra.mxu0 %v459
  %525 = vmatprep.subr.mxu0 %v462
  %526 = vmatpush1.msra.mxu0 %v461
  %527 = vmatprep.subr.mxu0 %v464
  %528 = vmatpush1.msra.mxu0 %v463
  %529 = vmatprep.mubr.f32.mxu0 %v400
  %530 = vmatmul.mubr.f32.gmra.mrb[0].mxu0 %v399
  %v531 = vpop.f32.mrb[0].mxu0
  %v532 = vadd.f32 0.0, %v531
  %v533 = vpop.f32.mrb[0].mxu0
  %v534 = vadd.f32 0.0, %v533
  %535 = vdwg.mxu0
  %s536 = scalar_lea.vmem %s2, 1
  %v537 = vld [vmem:[%s536] ss:$4 sm:$0x3]
  %vm538 = vcmp.gt.f32.partialorder %v537, 0.5
  %v539 = vld [vmem:[%s1 + $0x18] sm:$0xff]
  %540 = vrot.lane.b32.xlu0 %v532, 2
  %v541 = vpop.permute.xlu0 %540
  %542 = vrot.lane.b32.xlu0 %v534, 2
  %v543 = vpop.permute.xlu0 %542
  %vm544 = vcmp.lt.s32.totalorder %v40, 2
  %v545 = vsel %vm544, %v541, %v543
  %v546 = vsel %vm544, %v543, %v541
  %547 = vrot.lane.b32.xlu0 %v532, 1
  %v548 = vpop.permute.xlu0 %547
  %549 = vrot.lane.b32.xlu0 %v534, 1
  %v550 = vpop.permute.xlu0 %549
  %v551 = vsel %vm41, %v548, %v550
  %v552 = vsel %vm41, %v550, %v548
  %553 = vrot.lane.b32.xlu0 %v532, 127
  %v554 = vpop.permute.xlu0 %553
  %555 = vrot.lane.b32.xlu0 %v534, 127
  %v556 = vpop.permute.xlu0 %555
  %v557 = vsel %vm48, %v554, %v556
  %v558 = vsel %vm48, %v556, %v554
  %559 = vrot.lane.b32.xlu0 %v532, 126
  %v560 = vpop.permute.xlu0 %559
  %561 = vrot.lane.b32.xlu0 %v534, 126
  %v562 = vpop.permute.xlu0 %561
  %v563 = vsel %vm396, %v560, %v562
  %v564 = vsel %vm396, %v562, %v560
  %v567 = vrot.slane %v552, 4
  %v568 = vrot.slane %v551, 4
  %v573 = vrot.slane %v557, 4
  %v574 = vrot.slane %v558, 4
  %v578 = vlaneseq
  %v579 = vshrl.u32 %v578, 7
  %v580 = vsub.s32 0, %v579
  %v581 = vrot.slane %v537, %v580
  %v582 = vlaneseq
  %v583 = vshrl.u32 %v582, 7
  %v584 = vsub.s32 1, %v583
  %v585 = vrot.slane %v537, %v584
  %v588 = vsel %vm81, %v546, %v567
  %v589 = vsel %vm81, %v545, %v568
  %v590 = vsel %vm81, %v532, %v573
  %v591 = vsel %vm81, %v534, %v574
  %v592 = vsel %vm81, %v563, %v581
  %v593 = vsel %vm81, %v564, %v585
  %vm594 = vcmask 171008
  %v596 = vsel %vm594, %v539, 0
  %v599 = vsel %vm199, %v592, 0
  %v602 = vsel %vm199, %v593, 0
  %604 = vmatprep.subr.mxu0 %v589
  %605 = vmatpush1.msra.mxu0 %v588
  %606 = vmatprep.subr.mxu0 %v591
  %607 = vmatpush1.msra.mxu0 %v590
  %608 = vmatprep.subr.mxu0 %v602
  %609 = vmatpush1.msra.mxu0 %v599
  %610 = vmatprep.subr.mxu0 0.0
  %611 = vmatpush1.msra.mxu0 0.0
  %612 = vmatprep.subr.mxu0 0.0
  %613 = vmatpush1.msra.mxu0 0.0
  %614 = vmatprep.subr.mxu0 0.0
  %615 = vmatpush1.msra.mxu0 0.0
  %616 = vmatprep.subr.mxu0 0.0
  %617 = vmatpush1.msra.mxu0 0.0
  %618 = vmatprep.subr.mxu0 0.0
  %619 = vmatpush1.msra.mxu0 0.0
  %620 = vmatprep.subr.mxu0 0.0
  %621 = vmatpush1.msra.mxu0 0.0
  %622 = vmatprep.subr.mxu0 0.0
  %623 = vmatpush1.msra.mxu0 0.0
  %624 = vmatprep.subr.mxu0 0.0
  %625 = vmatpush1.msra.mxu0 0.0
  %626 = vmatprep.subr.mxu0 0.0
  %627 = vmatpush1.msra.mxu0 0.0
  %628 = vmatprep.subr.mxu0 0.0
  %629 = vmatpush1.msra.mxu0 0.0
  %630 = vmatprep.subr.mxu0 0.0
  %631 = vmatpush1.msra.mxu0 0.0
  %632 = vmatprep.subr.mxu0 0.0
  %633 = vmatpush1.msra.mxu0 0.0
  %634 = vmatprep.subr.mxu0 0.0
  %635 = vmatpush1.msra.mxu0 0.0
  %636 = vmatprep.subr.mxu0 0.0
  %637 = vmatpush1.msra.mxu0 0.0
  %638 = vmatprep.subr.mxu0 0.0
  %639 = vmatpush1.msra.mxu0 0.0
  %640 = vmatprep.subr.mxu0 0.0
  %641 = vmatpush1.msra.mxu0 0.0
  %642 = vmatprep.subr.mxu0 0.0
  %643 = vmatpush1.msra.mxu0 0.0
  %644 = vmatprep.subr.mxu0 0.0
  %645 = vmatpush1.msra.mxu0 0.0
  %646 = vmatprep.subr.mxu0 0.0
  %647 = vmatpush1.msra.mxu0 0.0
  %648 = vmatprep.subr.mxu0 0.0
  %649 = vmatpush1.msra.mxu0 0.0
  %650 = vmatprep.subr.mxu0 0.0
  %651 = vmatpush1.msra.mxu0 0.0
  %652 = vmatprep.subr.mxu0 0.0
  %653 = vmatpush1.msra.mxu0 0.0
  %654 = vmatprep.subr.mxu0 0.0
  %655 = vmatpush1.msra.mxu0 0.0
  %656 = vmatprep.subr.mxu0 0.0
  %657 = vmatpush1.msra.mxu0 0.0
  %658 = vmatprep.subr.mxu0 0.0
  %659 = vmatpush1.msra.mxu0 0.0
  %660 = vmatprep.subr.mxu0 0.0
  %661 = vmatpush1.msra.mxu0 0.0
  %662 = vmatprep.subr.mxu0 0.0
  %663 = vmatpush1.msra.mxu0 0.0
  %664 = vmatprep.subr.mxu0 0.0
  %665 = vmatpush1.msra.mxu0 0.0
  %666 = vmatprep.subr.mxu0 0.0
  %667 = vmatpush1.msra.mxu0 0.0
  %668 = vmatprep.mubr.f32.mxu0 0.0
  %669 = vmatmul.mubr.f32.gmra.mrb[0].mxu0 %v596
  %v670 = vpop.f32.mrb[0].mxu0
  %v671 = vadd.f32 0.0, %v670
  %v672 = vpop.f32.mrb[0].mxu0
  %v673 = vadd.f32 0.0, %v672
  %674 = vdwg.mxu0
  %v675 = vsel %vm538, 1, 0
  %v676 = vlaneseq
  %v677 = vshrl.u32 %v676, 7
  %v678 = vsub.s32 0, %v677
  %v679 = vrot.slane %v675, %v678
  %v680 = vlaneseq
  %v681 = vshrl.u32 %v680, 7
  %v682 = vsub.s32 1, %v681
  %v683 = vrot.slane %v675, %v682
  %vm684 = vcmp.eq.s32.totalorder %v679, 1
  %vm685 = vcmp.eq.s32.totalorder %v683, 1
  %v686 = vsel %vm684, %v671, 0.0
  %v687 = vsel %vm685, %v673, 0.0
  %v688 = vld [vmem:[%s1 + $0x20] sm:$0xff]
  %689 = vrot.lane.b32.xlu0 %v686, 2
  %v690 = vpop.permute.xlu0 %689
  %691 = vrot.lane.b32.xlu0 %v687, 2
  %v692 = vpop.permute.xlu0 %691
  %v693 = vsel %vm544, %v690, %v692
  %v694 = vsel %vm544, %v692, %v690
  %695 = vrot.lane.b32.xlu0 %v686, 1
  %v696 = vpop.permute.xlu0 %695
  %697 = vrot.lane.b32.xlu0 %v687, 1
  %v698 = vpop.permute.xlu0 %697
  %v699 = vsel %vm41, %v696, %v698
  %v700 = vsel %vm41, %v698, %v696
  %701 = vrot.lane.b32.xlu0 %v686, 127
  %v702 = vpop.permute.xlu0 %701
  %703 = vrot.lane.b32.xlu0 %v687, 127
  %v704 = vpop.permute.xlu0 %703
  %v705 = vsel %vm48, %v702, %v704
  %v706 = vsel %vm48, %v704, %v702
  %707 = vrot.lane.b32.xlu0 %v686, 126
  %v708 = vpop.permute.xlu0 %707
  %709 = vrot.lane.b32.xlu0 %v687, 126
  %v710 = vpop.permute.xlu0 %709
  %v711 = vsel %vm396, %v708, %v710
  %v712 = vsel %vm396, %v710, %v708
  %vm713 = vcmask 334848
  %v715 = vsel %vm713, %v688, 0
  %v717 = vsel %vm68, %v581, 0
  %v719 = vsel %vm68, %v585, 0
  %721 = vmatprep.subr.mxu0 %v693
  %722 = vmatpush1.msra.mxu0 %v694
  %723 = vmatprep.subr.mxu0 %v699
  %724 = vmatpush1.msra.mxu0 %v700
  %725 = vmatprep.subr.mxu0 %v687
  %726 = vmatpush1.msra.mxu0 %v686
  %727 = vmatprep.subr.mxu0 %v706
  %728 = vmatpush1.msra.mxu0 %v705
  %729 = vmatprep.subr.mxu0 %v712
  %730 = vmatpush1.msra.mxu0 %v711
  %731 = vmatprep.subr.mxu0 %v719
  %732 = vmatpush1.msra.mxu0 %v717
  %733 = vmatprep.subr.mxu0 0.0
  %734 = vmatpush1.msra.mxu0 0.0
  %735 = vmatprep.subr.mxu0 0.0
  %736 = vmatpush1.msra.mxu0 0.0
  %737 = vmatprep.subr.mxu0 0.0
  %738 = vmatpush1.msra.mxu0 0.0
  %739 = vmatprep.subr.mxu0 0.0
  %740 = vmatpush1.msra.mxu0 0.0
  %741 = vmatprep.subr.mxu0 0.0
  %742 = vmatpush1.msra.mxu0 0.0
  %743 = vmatprep.subr.mxu0 0.0
  %744 = vmatpush1.msra.mxu0 0.0
  %745 = vmatprep.subr.mxu0 0.0
  %746 = vmatpush1.msra.mxu0 0.0
  %747 = vmatprep.subr.mxu0 0.0
  %748 = vmatpush1.msra.mxu0 0.0
  %749 = vmatprep.subr.mxu0 0.0
  %750 = vmatpush1.msra.mxu0 0.0
  %751 = vmatprep.subr.mxu0 0.0
  %752 = vmatpush1.msra.mxu0 0.0
  %753 = vmatprep.subr.mxu0 0.0
  %754 = vmatpush1.msra.mxu0 0.0
  %755 = vmatprep.subr.mxu0 0.0
  %756 = vmatpush1.msra.mxu0 0.0
  %757 = vmatprep.subr.mxu0 0.0
  %758 = vmatpush1.msra.mxu0 0.0
  %759 = vmatprep.subr.mxu0 0.0
  %760 = vmatpush1.msra.mxu0 0.0
  %761 = vmatprep.subr.mxu0 0.0
  %762 = vmatpush1.msra.mxu0 0.0
  %763 = vmatprep.subr.mxu0 0.0
  %764 = vmatpush1.msra.mxu0 0.0
  %765 = vmatprep.subr.mxu0 0.0
  %766 = vmatpush1.msra.mxu0 0.0
  %767 = vmatprep.subr.mxu0 0.0
  %768 = vmatpush1.msra.mxu0 0.0
  %769 = vmatprep.subr.mxu0 0.0
  %770 = vmatpush1.msra.mxu0 0.0
  %771 = vmatprep.subr.mxu0 0.0
  %772 = vmatpush1.msra.mxu0 0.0
  %773 = vmatprep.subr.mxu0 0.0
  %774 = vmatpush1.msra.mxu0 0.0
  %775 = vmatprep.subr.mxu0 0.0
  %776 = vmatpush1.msra.mxu0 0.0
  %777 = vmatprep.subr.mxu0 0.0
  %778 = vmatpush1.msra.mxu0 0.0
  %779 = vmatprep.subr.mxu0 0.0
  %780 = vmatpush1.msra.mxu0 0.0
  %781 = vmatprep.subr.mxu0 0.0
  %782 = vmatpush1.msra.mxu0 0.0
  %783 = vmatprep.subr.mxu0 0.0
  %784 = vmatpush1.msra.mxu0 0.0
  %785 = vmatprep.mubr.f32.mxu0 0.0
  %786 = vmatmul.mubr.f32.gmra.mrb[0].mxu0 %v715
  %v787 = vpop.f32.mrb[0].mxu0
  %v788 = vadd.f32 0.0, %v787
  %v789 = vpop.f32.mrb[0].mxu0
  %v790 = vadd.f32 0.0, %v789
  %791 = vdwg.mxu0
  %v792 = vsel %vm684, %v788, 0.0
  %v793 = vsel %vm685, %v790, 0.0
  %v794 = vld [vmem:[%s1 + $0x28] sm:$0xff]
  %795 = vrot.lane.b32.xlu0 %v792, 2
  %v796 = vpop.permute.xlu0 %795
  %797 = vrot.lane.b32.xlu0 %v793, 2
  %v798 = vpop.permute.xlu0 %797
  %v799 = vsel %vm544, %v796, %v798
  %v800 = vsel %vm544, %v798, %v796
  %801 = vrot.lane.b32.xlu0 %v792, 1
  %v802 = vpop.permute.xlu0 %801
  %803 = vrot.lane.b32.xlu0 %v793, 1
  %v804 = vpop.permute.xlu0 %803
  %v805 = vsel %vm41, %v802, %v804
  %v806 = vsel %vm41, %v804, %v802
  %807 = vrot.lane.b32.xlu0 %v792, 127
  %v808 = vpop.permute.xlu0 %807
  %809 = vrot.lane.b32.xlu0 %v793, 127
  %v810 = vpop.permute.xlu0 %809
  %v811 = vsel %vm48, %v808, %v810
  %v812 = vsel %vm48, %v810, %v808
  %813 = vrot.lane.b32.xlu0 %v792, 126
  %v814 = vpop.permute.xlu0 %813
  %815 = vrot.lane.b32.xlu0 %v793, 126
  %v816 = vpop.permute.xlu0 %815
  %v817 = vsel %vm396, %v814, %v816
  %v818 = vsel %vm396, %v816, %v814
  %v820 = vsel %vm713, %v794, 0
  %822 = vmatprep.subr.mxu0 %v799
  %823 = vmatpush1.msra.mxu0 %v800
  %824 = vmatprep.subr.mxu0 %v805
  %825 = vmatpush1.msra.mxu0 %v806
  %826 = vmatprep.subr.mxu0 %v793
  %827 = vmatpush1.msra.mxu0 %v792
  %828 = vmatprep.subr.mxu0 %v812
  %829 = vmatpush1.msra.mxu0 %v811
  %830 = vmatprep.subr.mxu0 %v818
  %831 = vmatpush1.msra.mxu0 %v817
  %832 = vmatprep.subr.mxu0 %v719
  %833 = vmatpush1.msra.mxu0 %v717
  %834 = vmatprep.subr.mxu0 0.0
  %835 = vmatpush1.msra.mxu0 0.0
  %836 = vmatprep.subr.mxu0 0.0
  %837 = vmatpush1.msra.mxu0 0.0
  %838 = vmatprep.subr.mxu0 0.0
  %839 = vmatpush1.msra.mxu0 0.0
  %840 = vmatprep.subr.mxu0 0.0
  %841 = vmatpush1.msra.mxu0 0.0
  %842 = vmatprep.subr.mxu0 0.0
  %843 = vmatpush1.msra.mxu0 0.0
  %844 = vmatprep.subr.mxu0 0.0
  %845 = vmatpush1.msra.mxu0 0.0
  %846 = vmatprep.subr.mxu0 0.0
  %847 = vmatpush1.msra.mxu0 0.0
  %848 = vmatprep.subr.mxu0 0.0
  %849 = vmatpush1.msra.mxu0 0.0
  %850 = vmatprep.subr.mxu0 0.0
  %851 = vmatpush1.msra.mxu0 0.0
  %852 = vmatprep.subr.mxu0 0.0
  %853 = vmatpush1.msra.mxu0 0.0
  %854 = vmatprep.subr.mxu0 0.0
  %855 = vmatpush1.msra.mxu0 0.0
  %856 = vmatprep.subr.mxu0 0.0
  %857 = vmatpush1.msra.mxu0 0.0
  %858 = vmatprep.subr.mxu0 0.0
  %859 = vmatpush1.msra.mxu0 0.0
  %860 = vmatprep.subr.mxu0 0.0
  %861 = vmatpush1.msra.mxu0 0.0
  %862 = vmatprep.subr.mxu0 0.0
  %863 = vmatpush1.msra.mxu0 0.0
  %864 = vmatprep.subr.mxu0 0.0
  %865 = vmatpush1.msra.mxu0 0.0
  %866 = vmatprep.subr.mxu0 0.0
  %867 = vmatpush1.msra.mxu0 0.0
  %868 = vmatprep.subr.mxu0 0.0
  %869 = vmatpush1.msra.mxu0 0.0
  %870 = vmatprep.subr.mxu0 0.0
  %871 = vmatpush1.msra.mxu0 0.0
  %872 = vmatprep.subr.mxu0 0.0
  %873 = vmatpush1.msra.mxu0 0.0
  %874 = vmatprep.subr.mxu0 0.0
  %875 = vmatpush1.msra.mxu0 0.0
  %876 = vmatprep.subr.mxu0 0.0
  %877 = vmatpush1.msra.mxu0 0.0
  %878 = vmatprep.subr.mxu0 0.0
  %879 = vmatpush1.msra.mxu0 0.0
  %880 = vmatprep.subr.mxu0 0.0
  %881 = vmatpush1.msra.mxu0 0.0
  %882 = vmatprep.subr.mxu0 0.0
  %883 = vmatpush1.msra.mxu0 0.0
  %884 = vmatprep.subr.mxu0 0.0
  %885 = vmatpush1.msra.mxu0 0.0
  %886 = vmatprep.mubr.f32.mxu0 0.0
  %887 = vmatmul.mubr.f32.gmra.mrb[0].mxu0 %v820
  %v888 = vpop.f32.mrb[0].mxu0
  %v889 = vadd.f32 0.0, %v888
  %v890 = vpop.f32.mrb[0].mxu0
  %v891 = vadd.f32 0.0, %v890
  %892 = vdwg.mxu0
  %v893 = vsel %vm684, %v889, -1e+30
  %v894 = vsel %vm685, %v891, -1e+30
  %895 = vrot.lane.b32.xlu0 %v893, 127
  %v896 = vpop.permute.xlu0 %895
  %897 = vrot.lane.b32.xlu0 %v894, 127
  %v898 = vpop.permute.xlu0 %897
  %v899 = vsel %vm48, %v896, %v898
  %v900 = vsel %vm48, %v898, %v896
  %v901 = vmax.f32 %v893, %v899
  %v902 = vmax.f32 %v894, %v900
  %903 = vrot.lane.b32.xlu0 %v893, 126
  %v904 = vpop.permute.xlu0 %903
  %905 = vrot.lane.b32.xlu0 %v894, 126
  %v906 = vpop.permute.xlu0 %905
  %v907 = vsel %vm396, %v904, %v906
  %v908 = vsel %vm396, %v906, %v904
  %v909 = vmax.f32 %v901, %v907
  %v910 = vmax.f32 %v902, %v908
  %911 = vrot.lane.b32.xlu0 %v893, 125
  %v912 = vpop.permute.xlu0 %911
  %913 = vrot.lane.b32.xlu0 %v894, 125
  %v914 = vpop.permute.xlu0 %913
  %vm915 = vcmp.lt.s32.totalorder %v40, 125
  %v916 = vsel %vm915, %v912, %v914
  %v917 = vsel %vm915, %v914, %v912
  %v918 = vmax.f32 %v909, %v916
  %v919 = vmax.f32 %v910, %v917
  %920 = vrot.lane.b32.xlu0 %v893, 124
  %v921 = vpop.permute.xlu0 %920
  %922 = vrot.lane.b32.xlu0 %v894, 124
  %v923 = vpop.permute.xlu0 %922
  %vm924 = vcmp.lt.s32.totalorder %v40, 124
  %v925 = vsel %vm924, %v921, %v923
  %v926 = vsel %vm924, %v923, %v921
  %v927 = vmax.f32 %v918, %v925
  %v928 = vmax.f32 %v919, %v926
  %v929 = vld [vmem:[%s4] sm:$0xff]
  %v930 = vld [vmem:[%s4 + $0x8] sm:$0xff]
  %v931 = vld [vmem:[%s4 + $0x10] sm:$0xff]
  %v932 = vld [vmem:[%s4 + $0x18] sm:$0xff]
  %v933 = vld [vmem:[%s4 + $0x20] sm:$0xff]
  %v934 = vld [vmem:[%s4 + $0x28] sm:$0xff]
  %v935 = vld [vmem:[%s4 + $0x30] sm:$0xff]
  %v936 = vld [vmem:[%s4 + $0x38] sm:$0xff]
  %v937 = vld [vmem:[%s4 + $0x40] sm:$0xff]
  %v938 = vld [vmem:[%s4 + $0x48] sm:$0xff]
  %v939 = vld [vmem:[%s4 + $0x50] sm:$0xff]
  %v940 = vld [vmem:[%s4 + $0x58] sm:$0xff]
  %v941 = vld [vmem:[%s4 + $0x60] sm:$0xff]
  %v942 = vld [vmem:[%s4 + $0x68] sm:$0xff]
  %v943 = vld [vmem:[%s4 + $0x70] sm:$0xff]
  %v944 = vld [vmem:[%s4 + $0x78] sm:$0xff]
  %v945 = vld [vmem:[%s4 + $0x80] sm:$0xff]
  %v946 = vld [vmem:[%s4 + $0x88] sm:$0xff]
  %v947 = vld [vmem:[%s4 + $0x90] sm:$0xff]
  %v948 = vld [vmem:[%s4 + $0x98] sm:$0xff]
  %v949 = vld [vmem:[%s4 + $0xa0] sm:$0xff]
  %v950 = vld [vmem:[%s4 + $0xa8] sm:$0xff]
  %v951 = vld [vmem:[%s4 + $0xb0] sm:$0xff]
  %v952 = vld [vmem:[%s4 + $0xb8] sm:$0xff]
  %v953 = vld [vmem:[%s4 + $0xc0] sm:$0xff]
  %v954 = vld [vmem:[%s4 + $0xc8] sm:$0xff]
  %v955 = vld [vmem:[%s4 + $0xd0] sm:$0xff]
  %v956 = vld [vmem:[%s4 + $0xd8] sm:$0xff]
  %v957 = vld [vmem:[%s4 + $0xe0] sm:$0xff]
  %v958 = vld [vmem:[%s4 + $0xe8] sm:$0xff]
  %v959 = vld [vmem:[%s4 + $0xf0] sm:$0xff]
  %v960 = vld [vmem:[%s4 + $0xf8] sm:$0xff]
  %v961 = vld [vmem:[%s4 + $0x100] sm:$0xff]
  %v962 = vld [vmem:[%s4 + $0x108] sm:$0xff]
  %v963 = vld [vmem:[%s4 + $0x110] sm:$0xff]
  %v964 = vld [vmem:[%s4 + $0x118] sm:$0xff]
  %v965 = vld [vmem:[%s4 + $0x120] sm:$0xff]
  %v966 = vld [vmem:[%s4 + $0x128] sm:$0xff]
  %v967 = vld [vmem:[%s4 + $0x130] sm:$0xff]
  %v968 = vld [vmem:[%s4 + $0x138] sm:$0xff]
  %v969 = vld [vmem:[%s4 + $0x140] sm:$0xff]
  %v970 = vld [vmem:[%s4 + $0x148] sm:$0xff]
  %v971 = vld [vmem:[%s4 + $0x150] sm:$0xff]
  %v972 = vld [vmem:[%s4 + $0x158] sm:$0xff]
  %v973 = vld [vmem:[%s4 + $0x160] sm:$0xff]
  %v974 = vld [vmem:[%s4 + $0x168] sm:$0xff]
  %v975 = vld [vmem:[%s4 + $0x170] sm:$0xff]
  %v976 = vld [vmem:[%s4 + $0x178] sm:$0xff]
  %v977 = vld [vmem:[%s4 + $0x180] sm:$0xff]
  %v978 = vld [vmem:[%s4 + $0x188] sm:$0xff]
  %v979 = vld [vmem:[%s4 + $0x190] sm:$0xff]
  %v980 = vld [vmem:[%s4 + $0x198] sm:$0xff]
  %v981 = vld [vmem:[%s4 + $0x1a0] sm:$0xff]
  %v982 = vld [vmem:[%s4 + $0x1a8] sm:$0xff]
  %v983 = vld [vmem:[%s4 + $0x1b0] sm:$0xff]
  %v984 = vld [vmem:[%s4 + $0x1b8] sm:$0xff]
  %v985 = vld [vmem:[%s4 + $0x1c0] sm:$0xff]
  %v986 = vld [vmem:[%s4 + $0x1c8] sm:$0xff]
  %v987 = vld [vmem:[%s4 + $0x1d0] sm:$0xff]
  %v988 = vld [vmem:[%s4 + $0x1d8] sm:$0xff]
  %v989 = vld [vmem:[%s4 + $0x1e0] sm:$0xff]
  %v990 = vld [vmem:[%s4 + $0x1e8] sm:$0xff]
  %v991 = vld [vmem:[%s4 + $0x1f0] sm:$0xff]
  %v992 = vld [vmem:[%s4 + $0x1f8] sm:$0xff]
  %993 = vmatprep.subr.mxu0 %v930
  %994 = vmatpush1.msra.mxu0 %v929
  %995 = vmatprep.subr.mxu0 %v932
  %996 = vmatpush1.msra.mxu0 %v931
  %997 = vmatprep.subr.mxu0 %v934
  %998 = vmatpush1.msra.mxu0 %v933
  %999 = vmatprep.subr.mxu0 %v936
  %1000 = vmatpush1.msra.mxu0 %v935
  %1001 = vmatprep.subr.mxu0 %v938
  %1002 = vmatpush1.msra.mxu0 %v937
  %1003 = vmatprep.subr.mxu0 %v940
  %1004 = vmatpush1.msra.mxu0 %v939
  %1005 = vmatprep.subr.mxu0 %v942
  %1006 = vmatpush1.msra.mxu0 %v941
  %1007 = vmatprep.subr.mxu0 %v944
  %1008 = vmatpush1.msra.mxu0 %v943
  %1009 = vmatprep.subr.mxu0 %v946
  %1010 = vmatpush1.msra.mxu0 %v945
  %1011 = vmatprep.subr.mxu0 %v948
  %1012 = vmatpush1.msra.mxu0 %v947
  %1013 = vmatprep.subr.mxu0 %v950
  %1014 = vmatpush1.msra.mxu0 %v949
  %1015 = vmatprep.subr.mxu0 %v952
  %1016 = vmatpush1.msra.mxu0 %v951
  %1017 = vmatprep.subr.mxu0 %v954
  %1018 = vmatpush1.msra.mxu0 %v953
  %1019 = vmatprep.subr.mxu0 %v956
  %1020 = vmatpush1.msra.mxu0 %v955
  %1021 = vmatprep.subr.mxu0 %v958
  %1022 = vmatpush1.msra.mxu0 %v957
  %1023 = vmatprep.subr.mxu0 %v960
  %1024 = vmatpush1.msra.mxu0 %v959
  %1025 = vmatprep.subr.mxu0 %v962
  %1026 = vmatpush1.msra.mxu0 %v961
  %1027 = vmatprep.subr.mxu0 %v964
  %1028 = vmatpush1.msra.mxu0 %v963
  %1029 = vmatprep.subr.mxu0 %v966
  %1030 = vmatpush1.msra.mxu0 %v965
  %1031 = vmatprep.subr.mxu0 %v968
  %1032 = vmatpush1.msra.mxu0 %v967
  %1033 = vmatprep.subr.mxu0 %v970
  %1034 = vmatpush1.msra.mxu0 %v969
  %1035 = vmatprep.subr.mxu0 %v972
  %1036 = vmatpush1.msra.mxu0 %v971
  %1037 = vmatprep.subr.mxu0 %v974
  %1038 = vmatpush1.msra.mxu0 %v973
  %1039 = vmatprep.subr.mxu0 %v976
  %1040 = vmatpush1.msra.mxu0 %v975
  %1041 = vmatprep.subr.mxu0 %v978
  %1042 = vmatpush1.msra.mxu0 %v977
  %1043 = vmatprep.subr.mxu0 %v980
  %1044 = vmatpush1.msra.mxu0 %v979
  %1045 = vmatprep.subr.mxu0 %v982
  %1046 = vmatpush1.msra.mxu0 %v981
  %1047 = vmatprep.subr.mxu0 %v984
  %1048 = vmatpush1.msra.mxu0 %v983
  %1049 = vmatprep.subr.mxu0 %v986
  %1050 = vmatpush1.msra.mxu0 %v985
  %1051 = vmatprep.subr.mxu0 %v988
  %1052 = vmatpush1.msra.mxu0 %v987
  %1053 = vmatprep.subr.mxu0 %v990
  %1054 = vmatpush1.msra.mxu0 %v989
  %1055 = vmatprep.subr.mxu0 %v992
  %1056 = vmatpush1.msra.mxu0 %v991
  %1057 = vmatprep.mubr.f32.mxu0 %v928
  %1058 = vmatmul.mubr.f32.gmra.mrb[0].mxu0 %v927
  %v1059 = vpop.f32.mrb[0].mxu0
  %v1060 = vadd.f32 0.0, %v1059
  %v1061 = vpop.f32.mrb[0].mxu0
  %v1062 = vadd.f32 0.0, %v1061
  %1063 = vdwg.mxu0
  %s1064 = scalar_lea.vmem %s2, 2
  %v1065 = vld [vmem:[%s1064] ss:$4 sm:$0x3]
  %vm1066 = vcmp.gt.f32.partialorder %v1065, 0.5
  %v1067 = vld [vmem:[%s1 + $0x30] sm:$0xff]
  %v1068 = vld [vmem:[%s1 + $0x38] sm:$0xff]
  %1069 = vrot.lane.b32.xlu0 %v1060, 2
  %v1070 = vpop.permute.xlu0 %1069
  %1071 = vrot.lane.b32.xlu0 %v1062, 2
  %v1072 = vpop.permute.xlu0 %1071
  %v1073 = vsel %vm544, %v1070, %v1072
  %v1074 = vsel %vm544, %v1072, %v1070
  %1075 = vrot.lane.b32.xlu0 %v1060, 1
  %v1076 = vpop.permute.xlu0 %1075
  %1077 = vrot.lane.b32.xlu0 %v1062, 1
  %v1078 = vpop.permute.xlu0 %1077
  %v1079 = vsel %vm41, %v1076, %v1078
  %v1080 = vsel %vm41, %v1078, %v1076
  %1081 = vrot.lane.b32.xlu0 %v1060, 127
  %v1082 = vpop.permute.xlu0 %1081
  %1083 = vrot.lane.b32.xlu0 %v1062, 127
  %v1084 = vpop.permute.xlu0 %1083
  %v1085 = vsel %vm48, %v1082, %v1084
  %v1086 = vsel %vm48, %v1084, %v1082
  %1087 = vrot.lane.b32.xlu0 %v1060, 126
  %v1088 = vpop.permute.xlu0 %1087
  %1089 = vrot.lane.b32.xlu0 %v1062, 126
  %v1090 = vpop.permute.xlu0 %1089
  %v1091 = vsel %vm396, %v1088, %v1090
  %v1092 = vsel %vm396, %v1090, %v1088
  %v1094 = vlaneseq
  %v1095 = vshrl.u32 %v1094, 7
  %v1096 = vsub.s32 0, %v1095
  %v1097 = vrot.slane %v1065, %v1096
  %v1098 = vlaneseq
  %v1099 = vshrl.u32 %v1098, 7
  %v1100 = vsub.s32 1, %v1099
  %v1101 = vrot.slane %v1065, %v1100
  %v1103 = vsel %vm713, %v1067, 0
  %v1106 = vsel %vm713, %v1068, 0
  %v1108 = vsel %vm68, %v1097, 0
  %v1110 = vsel %vm68, %v1101, 0
  %1112 = vmatprep.subr.mxu0 %v1073
  %1113 = vmatpush1.msra.mxu0 %v1074
  %1114 = vmatprep.subr.mxu0 %v1079
  %1115 = vmatpush1.msra.mxu0 %v1080
  %1116 = vmatprep.subr.mxu0 %v1062
  %1117 = vmatpush1.msra.mxu0 %v1060
  %1118 = vmatprep.subr.mxu0 %v1086
  %1119 = vmatpush1.msra.mxu0 %v1085
  %1120 = vmatprep.subr.mxu0 %v1092
  %1121 = vmatpush1.msra.mxu0 %v1091
  %1122 = vmatprep.subr.mxu0 %v1110
  %1123 = vmatpush1.msra.mxu0 %v1108
  %1124 = vmatprep.subr.mxu0 0.0
  %1125 = vmatpush1.msra.mxu0 0.0
  %1126 = vmatprep.subr.mxu0 0.0
  %1127 = vmatpush1.msra.mxu0 0.0
  %1128 = vmatprep.subr.mxu0 0.0
  %1129 = vmatpush1.msra.mxu0 0.0
  %1130 = vmatprep.subr.mxu0 0.0
  %1131 = vmatpush1.msra.mxu0 0.0
  %1132 = vmatprep.subr.mxu0 0.0
  %1133 = vmatpush1.msra.mxu0 0.0
  %1134 = vmatprep.subr.mxu0 0.0
  %1135 = vmatpush1.msra.mxu0 0.0
  %1136 = vmatprep.subr.mxu0 0.0
  %1137 = vmatpush1.msra.mxu0 0.0
  %1138 = vmatprep.subr.mxu0 0.0
  %1139 = vmatpush1.msra.mxu0 0.0
  %1140 = vmatprep.subr.mxu0 0.0
  %1141 = vmatpush1.msra.mxu0 0.0
  %1142 = vmatprep.subr.mxu0 0.0
  %1143 = vmatpush1.msra.mxu0 0.0
  %1144 = vmatprep.subr.mxu0 0.0
  %1145 = vmatpush1.msra.mxu0 0.0
  %1146 = vmatprep.subr.mxu0 0.0
  %1147 = vmatpush1.msra.mxu0 0.0
  %1148 = vmatprep.subr.mxu0 0.0
  %1149 = vmatpush1.msra.mxu0 0.0
  %1150 = vmatprep.subr.mxu0 0.0
  %1151 = vmatpush1.msra.mxu0 0.0
  %1152 = vmatprep.subr.mxu0 0.0
  %1153 = vmatpush1.msra.mxu0 0.0
  %1154 = vmatprep.subr.mxu0 0.0
  %1155 = vmatpush1.msra.mxu0 0.0
  %1156 = vmatprep.subr.mxu0 0.0
  %1157 = vmatpush1.msra.mxu0 0.0
  %1158 = vmatprep.subr.mxu0 0.0
  %1159 = vmatpush1.msra.mxu0 0.0
  %1160 = vmatprep.subr.mxu0 0.0
  %1161 = vmatpush1.msra.mxu0 0.0
  %1162 = vmatprep.subr.mxu0 0.0
  %1163 = vmatpush1.msra.mxu0 0.0
  %1164 = vmatprep.subr.mxu0 0.0
  %1165 = vmatpush1.msra.mxu0 0.0
  %1166 = vmatprep.subr.mxu0 0.0
  %1167 = vmatpush1.msra.mxu0 0.0
  %1168 = vmatprep.subr.mxu0 0.0
  %1169 = vmatpush1.msra.mxu0 0.0
  %1170 = vmatprep.subr.mxu0 0.0
  %1171 = vmatpush1.msra.mxu0 0.0
  %1172 = vmatprep.subr.mxu0 0.0
  %1173 = vmatpush1.msra.mxu0 0.0
  %1174 = vmatprep.subr.mxu0 0.0
  %1175 = vmatpush1.msra.mxu0 0.0
  %1176 = vmatprep.mubr.f32.mxu0 0.0
  %1177 = vmatmul.mubr.f32.gmra.mrb[0].mxu0 %v1103
  %v1178 = vpop.f32.mrb[0].mxu0
  %v1179 = vadd.f32 0.0, %v1178
  %v1180 = vpop.f32.mrb[0].mxu0
  %v1181 = vadd.f32 0.0, %v1180
  %1182 = vmatprep.mubr.f32.mxu0 0.0
  %1183 = vmatmul.mubr.f32.gmra.mrb[0].mxu0 %v1106
  %v1184 = vpop.f32.mrb[0].mxu0
  %v1185 = vadd.f32 0.0, %v1184
  %v1186 = vpop.f32.mrb[0].mxu0
  %v1187 = vadd.f32 0.0, %v1186
  %1188 = vdwg.mxu0
  %v1189 = vsel %vm1066, 1, 0
  %v1190 = vlaneseq
  %v1191 = vshrl.u32 %v1190, 7
  %v1192 = vsub.s32 0, %v1191
  %v1193 = vrot.slane %v1189, %v1192
  %v1194 = vlaneseq
  %v1195 = vshrl.u32 %v1194, 7
  %v1196 = vsub.s32 1, %v1195
  %v1197 = vrot.slane %v1189, %v1196
  %vm1198 = vcmp.eq.s32.totalorder %v1193, 1
  %vm1199 = vcmp.eq.s32.totalorder %v1197, 1
  %v1200 = vsel %vm1198, %v1179, 0.0
  %v1201 = vsel %vm1199, %v1181, 0.0
  %v1202 = vsel %vm1198, %v1185, 0.0
  %v1203 = vsel %vm1199, %v1187, 0.0
  %v1204 = vld [vmem:[%s1 + $0x40] sm:$0xff]
  %v1205 = vld [vmem:[%s1 + $0x48] sm:$0xff]
  %1206 = vrot.lane.b32.xlu0 %v1200, 2
  %v1207 = vpop.permute.xlu0 %1206
  %1208 = vrot.lane.b32.xlu0 %v1202, 2
  %v1209 = vpop.permute.xlu0 %1208
  %1210 = vrot.lane.b32.xlu0 %v1201, 2
  %v1211 = vpop.permute.xlu0 %1210
  %1212 = vrot.lane.b32.xlu0 %v1203, 2
  %v1213 = vpop.permute.xlu0 %1212
  %v1214 = vsel %vm544, %v1207, %v1211
  %v1215 = vsel %vm544, %v1209, %v1213
  %v1216 = vsel %vm544, %v1211, %v1207
  %v1217 = vsel %vm544, %v1213, %v1209
  %1218 = vrot.lane.b32.xlu0 %v1200, 1
  %v1219 = vpop.permute.xlu0 %1218
  %1220 = vrot.lane.b32.xlu0 %v1202, 1
  %v1221 = vpop.permute.xlu0 %1220
  %1222 = vrot.lane.b32.xlu0 %v1201, 1
  %v1223 = vpop.permute.xlu0 %1222
  %1224 = vrot.lane.b32.xlu0 %v1203, 1
  %v1225 = vpop.permute.xlu0 %1224
  %v1226 = vsel %vm41, %v1219, %v1223
  %v1227 = vsel %vm41, %v1221, %v1225
  %v1228 = vsel %vm41, %v1223, %v1219
  %v1229 = vsel %vm41, %v1225, %v1221
  %1230 = vrot.lane.b32.xlu0 %v1200, 127
  %v1231 = vpop.permute.xlu0 %1230
  %1232 = vrot.lane.b32.xlu0 %v1202, 127
  %v1233 = vpop.permute.xlu0 %1232
  %1234 = vrot.lane.b32.xlu0 %v1201, 127
  %v1235 = vpop.permute.xlu0 %1234
  %1236 = vrot.lane.b32.xlu0 %v1203, 127
  %v1237 = vpop.permute.xlu0 %1236
  %v1238 = vsel %vm48, %v1231, %v1235
  %v1239 = vsel %vm48, %v1233, %v1237
  %v1240 = vsel %vm48, %v1235, %v1231
  %v1241 = vsel %vm48, %v1237, %v1233
  %1242 = vrot.lane.b32.xlu0 %v1200, 126
  %v1243 = vpop.permute.xlu0 %1242
  %1244 = vrot.lane.b32.xlu0 %v1202, 126
  %v1245 = vpop.permute.xlu0 %1244
  %1246 = vrot.lane.b32.xlu0 %v1201, 126
  %v1247 = vpop.permute.xlu0 %1246
  %1248 = vrot.lane.b32.xlu0 %v1203, 126
  %v1249 = vpop.permute.xlu0 %1248
  %v1250 = vsel %vm396, %v1243, %v1247
  %v1251 = vsel %vm396, %v1245, %v1249
  %v1252 = vsel %vm396, %v1247, %v1243
  %v1253 = vsel %vm396, %v1249, %v1245
  %vm1254 = vcmask 662528
  %v1256 = vsel %vm1254, %v1204, 0
  %v1259 = vsel %vm1254, %v1205, 0
  %1261 = vmatprep.subr.mxu0 %v1214
  %1262 = vmatpush1.msra.mxu0 %v1216
  %1263 = vmatprep.subr.mxu0 %v1215
  %1264 = vmatpush1.msra.mxu0 %v1217
  %1265 = vmatprep.subr.mxu0 %v1226
  %1266 = vmatpush1.msra.mxu0 %v1228
  %1267 = vmatprep.subr.mxu0 %v1227
  %1268 = vmatpush1.msra.mxu0 %v1229
  %1269 = vmatprep.subr.mxu0 %v1201
  %1270 = vmatpush1.msra.mxu0 %v1200
  %1271 = vmatprep.subr.mxu0 %v1203
  %1272 = vmatpush1.msra.mxu0 %v1202
  %1273 = vmatprep.subr.mxu0 %v1240
  %1274 = vmatpush1.msra.mxu0 %v1238
  %1275 = vmatprep.subr.mxu0 %v1241
  %1276 = vmatpush1.msra.mxu0 %v1239
  %1277 = vmatprep.subr.mxu0 %v1252
  %1278 = vmatpush1.msra.mxu0 %v1250
  %1279 = vmatprep.subr.mxu0 %v1253
  %1280 = vmatpush1.msra.mxu0 %v1251
  %1281 = vmatprep.subr.mxu0 %v1110
  %1282 = vmatpush1.msra.mxu0 %v1108
  %1283 = vmatprep.subr.mxu0 0.0
  %1284 = vmatpush1.msra.mxu0 0.0
  %1285 = vmatprep.subr.mxu0 0.0
  %1286 = vmatpush1.msra.mxu0 0.0
  %1287 = vmatprep.subr.mxu0 0.0
  %1288 = vmatpush1.msra.mxu0 0.0
  %1289 = vmatprep.subr.mxu0 0.0
  %1290 = vmatpush1.msra.mxu0 0.0
  %1291 = vmatprep.subr.mxu0 0.0
  %1292 = vmatpush1.msra.mxu0 0.0
  %1293 = vmatprep.subr.mxu0 0.0
  %1294 = vmatpush1.msra.mxu0 0.0
  %1295 = vmatprep.subr.mxu0 0.0
  %1296 = vmatpush1.msra.mxu0 0.0
  %1297 = vmatprep.subr.mxu0 0.0
  %1298 = vmatpush1.msra.mxu0 0.0
  %1299 = vmatprep.subr.mxu0 0.0
  %1300 = vmatpush1.msra.mxu0 0.0
  %1301 = vmatprep.subr.mxu0 0.0
  %1302 = vmatpush1.msra.mxu0 0.0
  %1303 = vmatprep.subr.mxu0 0.0
  %1304 = vmatpush1.msra.mxu0 0.0
  %1305 = vmatprep.subr.mxu0 0.0
  %1306 = vmatpush1.msra.mxu0 0.0
  %1307 = vmatprep.subr.mxu0 0.0
  %1308 = vmatpush1.msra.mxu0 0.0
  %1309 = vmatprep.subr.mxu0 0.0
  %1310 = vmatpush1.msra.mxu0 0.0
  %1311 = vmatprep.subr.mxu0 0.0
  %1312 = vmatpush1.msra.mxu0 0.0
  %1313 = vmatprep.subr.mxu0 0.0
  %1314 = vmatpush1.msra.mxu0 0.0
  %1315 = vmatprep.subr.mxu0 0.0
  %1316 = vmatpush1.msra.mxu0 0.0
  %1317 = vmatprep.subr.mxu0 0.0
  %1318 = vmatpush1.msra.mxu0 0.0
  %1319 = vmatprep.subr.mxu0 0.0
  %1320 = vmatpush1.msra.mxu0 0.0
  %1321 = vmatprep.subr.mxu0 0.0
  %1322 = vmatpush1.msra.mxu0 0.0
  %1323 = vmatprep.subr.mxu0 0.0
  %1324 = vmatpush1.msra.mxu0 0.0
  %1325 = vmatprep.mubr.f32.mxu0 0.0
  %1326 = vmatmul.mubr.f32.gmra.mrb[0].mxu0 %v1256
  %v1327 = vpop.f32.mrb[0].mxu0
  %v1328 = vadd.f32 0.0, %v1327
  %v1329 = vpop.f32.mrb[0].mxu0
  %v1330 = vadd.f32 0.0, %v1329
  %1331 = vmatprep.mubr.f32.mxu0 0.0
  %1332 = vmatmul.mubr.f32.gmra.mrb[0].mxu0 %v1259
  %v1333 = vpop.f32.mrb[0].mxu0
  %v1334 = vadd.f32 0.0, %v1333
  %v1335 = vpop.f32.mrb[0].mxu0
  %v1336 = vadd.f32 0.0, %v1335
  %1337 = vdwg.mxu0
  %v1338 = vsel %vm1198, %v1328, 0.0
  %v1339 = vsel %vm1199, %v1330, 0.0
  %v1340 = vsel %vm1198, %v1334, 0.0
  %v1341 = vsel %vm1199, %v1336, 0.0
  %v1342 = vld [vmem:[%s1 + $0x50] sm:$0xff]
  %v1343 = vld [vmem:[%s1 + $0x58] sm:$0xff]
  %1344 = vrot.lane.b32.xlu0 %v1338, 2
  %v1345 = vpop.permute.xlu0 %1344
  %1346 = vrot.lane.b32.xlu0 %v1340, 2
  %v1347 = vpop.permute.xlu0 %1346
  %1348 = vrot.lane.b32.xlu0 %v1339, 2
  %v1349 = vpop.permute.xlu0 %1348
  %1350 = vrot.lane.b32.xlu0 %v1341, 2
  %v1351 = vpop.permute.xlu0 %1350
  %v1352 = vsel %vm544, %v1345, %v1349
  %v1353 = vsel %vm544, %v1347, %v1351
  %v1354 = vsel %vm544, %v1349, %v1345
  %v1355 = vsel %vm544, %v1351, %v1347
  %1356 = vrot.lane.b32.xlu0 %v1338, 1
  %v1357 = vpop.permute.xlu0 %1356
  %1358 = vrot.lane.b32.xlu0 %v1340, 1
  %v1359 = vpop.permute.xlu0 %1358
  %1360 = vrot.lane.b32.xlu0 %v1339, 1
  %v1361 = vpop.permute.xlu0 %1360
  %1362 = vrot.lane.b32.xlu0 %v1341, 1
  %v1363 = vpop.permute.xlu0 %1362
  %v1364 = vsel %vm41, %v1357, %v1361
  %v1365 = vsel %vm41, %v1359, %v1363
  %v1366 = vsel %vm41, %v1361, %v1357
  %v1367 = vsel %vm41, %v1363, %v1359
  %1368 = vrot.lane.b32.xlu0 %v1338, 127
  %v1369 = vpop.permute.xlu0 %1368
  %1370 = vrot.lane.b32.xlu0 %v1340, 127
  %v1371 = vpop.permute.xlu0 %1370
  %1372 = vrot.lane.b32.xlu0 %v1339, 127
  %v1373 = vpop.permute.xlu0 %1372
  %1374 = vrot.lane.b32.xlu0 %v1341, 127
  %v1375 = vpop.permute.xlu0 %1374
  %v1376 = vsel %vm48, %v1369, %v1373
  %v1377 = vsel %vm48, %v1371, %v1375
  %v1378 = vsel %vm48, %v1373, %v1369
  %v1379 = vsel %vm48, %v1375, %v1371
  %1380 = vrot.lane.b32.xlu0 %v1338, 126
  %v1381 = vpop.permute.xlu0 %1380
  %1382 = vrot.lane.b32.xlu0 %v1340, 126
  %v1383 = vpop.permute.xlu0 %1382
  %1384 = vrot.lane.b32.xlu0 %v1339, 126
  %v1385 = vpop.permute.xlu0 %1384
  %1386 = vrot.lane.b32.xlu0 %v1341, 126
  %v1387 = vpop.permute.xlu0 %1386
  %v1388 = vsel %vm396, %v1381, %v1385
  %v1389 = vsel %vm396, %v1383, %v1387
  %v1390 = vsel %vm396, %v1385, %v1381
  %v1391 = vsel %vm396, %v1387, %v1383
  %v1393 = vsel %vm1254, %v1342, 0
  %v1396 = vsel %vm1254, %v1343, 0
  %1398 = vmatprep.subr.mxu0 %v1352
  %1399 = vmatpush1.msra.mxu0 %v1354
  %1400 = vmatprep.subr.mxu0 %v1353
  %1401 = vmatpush1.msra.mxu0 %v1355
  %1402 = vmatprep.subr.mxu0 %v1364
  %1403 = vmatpush1.msra.mxu0 %v1366
  %1404 = vmatprep.subr.mxu0 %v1365
  %1405 = vmatpush1.msra.mxu0 %v1367
  %1406 = vmatprep.subr.mxu0 %v1339
  %1407 = vmatpush1.msra.mxu0 %v1338
  %1408 = vmatprep.subr.mxu0 %v1341
  %1409 = vmatpush1.msra.mxu0 %v1340
  %1410 = vmatprep.subr.mxu0 %v1378
  %1411 = vmatpush1.msra.mxu0 %v1376
  %1412 = vmatprep.subr.mxu0 %v1379
  %1413 = vmatpush1.msra.mxu0 %v1377
  %1414 = vmatprep.subr.mxu0 %v1390
  %1415 = vmatpush1.msra.mxu0 %v1388
  %1416 = vmatprep.subr.mxu0 %v1391
  %1417 = vmatpush1.msra.mxu0 %v1389
  %1418 = vmatprep.subr.mxu0 %v1110
  %1419 = vmatpush1.msra.mxu0 %v1108
  %1420 = vmatprep.subr.mxu0 0.0
  %1421 = vmatpush1.msra.mxu0 0.0
  %1422 = vmatprep.subr.mxu0 0.0
  %1423 = vmatpush1.msra.mxu0 0.0
  %1424 = vmatprep.subr.mxu0 0.0
  %1425 = vmatpush1.msra.mxu0 0.0
  %1426 = vmatprep.subr.mxu0 0.0
  %1427 = vmatpush1.msra.mxu0 0.0
  %1428 = vmatprep.subr.mxu0 0.0
  %1429 = vmatpush1.msra.mxu0 0.0
  %1430 = vmatprep.subr.mxu0 0.0
  %1431 = vmatpush1.msra.mxu0 0.0
  %1432 = vmatprep.subr.mxu0 0.0
  %1433 = vmatpush1.msra.mxu0 0.0
  %1434 = vmatprep.subr.mxu0 0.0
  %1435 = vmatpush1.msra.mxu0 0.0
  %1436 = vmatprep.subr.mxu0 0.0
  %1437 = vmatpush1.msra.mxu0 0.0
  %1438 = vmatprep.subr.mxu0 0.0
  %1439 = vmatpush1.msra.mxu0 0.0
  %1440 = vmatprep.subr.mxu0 0.0
  %1441 = vmatpush1.msra.mxu0 0.0
  %1442 = vmatprep.subr.mxu0 0.0
  %1443 = vmatpush1.msra.mxu0 0.0
  %1444 = vmatprep.subr.mxu0 0.0
  %1445 = vmatpush1.msra.mxu0 0.0
  %1446 = vmatprep.subr.mxu0 0.0
  %1447 = vmatpush1.msra.mxu0 0.0
  %1448 = vmatprep.subr.mxu0 0.0
  %1449 = vmatpush1.msra.mxu0 0.0
  %1450 = vmatprep.subr.mxu0 0.0
  %1451 = vmatpush1.msra.mxu0 0.0
  %1452 = vmatprep.subr.mxu0 0.0
  %1453 = vmatpush1.msra.mxu0 0.0
  %1454 = vmatprep.subr.mxu0 0.0
  %1455 = vmatpush1.msra.mxu0 0.0
  %1456 = vmatprep.subr.mxu0 0.0
  %1457 = vmatpush1.msra.mxu0 0.0
  %1458 = vmatprep.subr.mxu0 0.0
  %1459 = vmatpush1.msra.mxu0 0.0
  %1460 = vmatprep.subr.mxu0 0.0
  %1461 = vmatpush1.msra.mxu0 0.0
  %1462 = vmatprep.mubr.f32.mxu0 0.0
  %1463 = vmatmul.mubr.f32.gmra.mrb[0].mxu0 %v1393
  %v1464 = vpop.f32.mrb[0].mxu0
  %v1465 = vadd.f32 0.0, %v1464
  %v1466 = vpop.f32.mrb[0].mxu0
  %v1467 = vadd.f32 0.0, %v1466
  %1468 = vmatprep.mubr.f32.mxu0 0.0
  %1469 = vmatmul.mubr.f32.gmra.mrb[0].mxu0 %v1396
  %v1470 = vpop.f32.mrb[0].mxu0
  %v1471 = vadd.f32 0.0, %v1470
  %v1472 = vpop.f32.mrb[0].mxu0
  %v1473 = vadd.f32 0.0, %v1472
  %1474 = vdwg.mxu0
  %v1475 = vsel %vm1198, %v1465, 0.0
  %v1476 = vsel %vm1199, %v1467, 0.0
  %v1477 = vsel %vm1198, %v1471, 0.0
  %v1478 = vsel %vm1199, %v1473, 0.0
  %1479 = vst [vmem:[%s5] sm:$0xff] %v1475
  %1480 = vst [vmem:[%s5 + $0x8] sm:$0xff] %v1476
  %1481 = vst [vmem:[%s5 + $0x10] sm:$0xff] %v1477
  %1482 = vst [vmem:[%s5 + $0x18] sm:$0xff] %v1478
  // Predicated region
  $region22: #{model_B.1} parent=0 // pred_check
    _
  $region23: #{model_B.1} parent=0 // pred_check_branch
    %1484 = sbr.rel (0) target = $region25
  $region24: #{model_B.1} parent=0 // pred_region
    _
  $region25: #{model_B.1} parent=0 // pred_fallthru
    _
  // Predicated region
  $region26: #{model_B.1} parent=0 // pred_check
    _
  $region27: #{model_B.1} parent=0 // pred_check_branch
    %1486 = sbr.rel (0) target = $region29
  $region28: #{model_B.1} parent=0 // pred_region
    _
  $region29: #{model_B.1} parent=0 // pred_fallthru
    _

</llo_original>
